<compile_context>
chip_gen: v7x
topology: tpu7x:2x2x1
jax: 0.10.0
libtpu: 0.0.40
codegen_flags: <defaults>
</compile_context>

<pallas_src>
import functools
import math

import jax
import jax.numpy as jnp
from jax.experimental import pallas as pl
from jax.experimental.pallas import tpu as pltpu


# ---------------------------------------------------------------------------
# Fused Pallas kernel: all LSTM layers + FC head in one call
# ---------------------------------------------------------------------------

def _fused_lstm_kernel(x_ref, wih_ref, whh_ref, b_ref, wfc_ref, bfc_ref,
                       out_ref, hseq_scr, gx_scr,
                       *, T, Bp, Hp, mm_dtype):
    """One grid step == one LSTM layer (layer index = pl.program_id(0)).

    x_ref   : (T*Bp, Dm)   padded, time-major, flattened layer-0 input
    wih_ref : (1, Dm, 4Hp) this layer's input->gate weights (transposed, padded)
    whh_ref : (1, Hp, 4Hp) this layer's hidden->gate weights (transposed, padded)
    b_ref   : (1, 1, 4Hp)  b_ih + b_hh, padded into 128-aligned gate lane spans
    wfc_ref : (Hp, Op)     FC head weight (transposed, padded)
    bfc_ref : (1, Op)      FC head bias (padded)
    out_ref : (Bp, Op)     logits; written only on the last layer
    hseq_scr: (T*Bp, Dm)   VMEM: current layer's input sequence; overwritten
                           with its output hidden sequence for the next layer
    gx_scr  : (T*Bp, 4Hp)  VMEM: hoisted input projection for all timesteps
    Gate order (PyTorch): i, f, g, o — gate k lives in lanes [k*Hp, (k+1)*Hp).
    """
    layer = pl.program_id(0)
    last_layer = pl.num_programs(0) - 1

    # Layer 0 consumes the padded input x; deeper layers consume the previous
    # layer's hidden sequence already sitting in hseq_scr (scratch persists
    # across grid steps).
    @pl.when(layer == 0)
    def _():
        hseq_scr[...] = x_ref[...]

    # ---- hoisted input projection: ONE big matmul over all T timesteps ----
    # (T*Bp, Dm) @ (Dm, 4Hp); any stale lanes beyond Hp in hseq_scr hit
    # zero-padded weight rows, so they contribute nothing.
    gx_scr[...] = (
        jnp.dot(hseq_scr[...].astype(mm_dtype), wih_ref[0].astype(mm_dtype),
                preferred_element_type=jnp.float32)
        + b_ref[0]
    )

    whh = whh_ref[0].astype(mm_dtype)   # hoisted cast, reused every timestep

    def step(t, h, c):
        row = t * Bp
        if not isinstance(row, int):          # dynamic index (fori_loop path)
            row = pl.multiple_of(row, Bp)
        gates = gx_scr[pl.ds(row, Bp), :] + jnp.dot(
            h.astype(mm_dtype), whh, preferred_element_type=jnp.float32)
        i_g = jax.nn.sigmoid(gates[:, 0 * Hp:1 * Hp])
        f_g = jax.nn.sigmoid(gates[:, 1 * Hp:2 * Hp])
        g_g = jnp.tanh(gates[:, 2 * Hp:3 * Hp])
        o_g = jax.nn.sigmoid(gates[:, 3 * Hp:4 * Hp])
        c_new = f_g * c + i_g * g_g
        h_new = o_g * jnp.tanh(c_new)
        # Hand the hidden sequence to the next layer (harmless on the last one;
        # lanes beyond Hp, if any, are masked out by zero weight rows).
        if Hp == hseq_scr.shape[1]:
            hseq_scr[pl.ds(row, Bp), :] = h_new
        else:
            hseq_scr[pl.ds(row, Bp), :Hp] = h_new
        return h_new, c_new

    h = jnp.zeros((Bp, Hp), jnp.float32)
    c = jnp.zeros((Bp, Hp), jnp.float32)
    if T <= 32:
        # Fully unrolled straight-line code (static slices, LLO visibility).
        for t in range(T):
            h, c = step(t, h, c)
    else:
        h, c = jax.lax.fori_loop(
            0, T, lambda t, hc: step(t, hc[0], hc[1]), (h, c))

    # ---- fused FC head on the last layer's final hidden state ----
    @pl.when(layer == last_layer)
    def _():
        logits = (
            jnp.dot(h.astype(mm_dtype), wfc_ref[...].astype(mm_dtype),
                    preferred_element_type=jnp.float32)
            + bfc_ref[...]
        )
        out_ref[...] = logits.astype(out_ref.dtype)


# ---------------------------------------------------------------------------
# Wrapper: padding / packing + pallas_call
# ---------------------------------------------------------------------------

def _ceil_to(n, m):
    return ((n + m - 1) // m) * m


def _pack_gates(w, H, Hp, n_rows):
    """w: (rows, 4H) fused-gate matrix (already transposed) -> (n_rows, 4Hp)
    with each gate placed at a 128-aligned lane offset k*Hp; rest zeros."""
    rows = w.shape[0]
    out = jnp.zeros((n_rows, 4 * Hp), jnp.float32)
    for k in range(4):
        out = out.at[:rows, k * Hp:k * Hp + H].set(w[:, k * H:(k + 1) * H])
    return out


def lstm_forward(x_btd, params, *, mm_dtype=jnp.bfloat16):
    """Equivalent of LSTM.forward: x (B, T, D) batch-first -> logits (B, O)."""
    x_btd = jnp.asarray(x_btd, jnp.float32)
    B, T, D = x_btd.shape
    layers = params["lstm"]
    L = len(layers)
    H = int(layers[0]["w_hh"].shape[1])
    O = int(params["fc_w"].shape[0])

    Bp = _ceil_to(max(B, 1), 8)       # sublane-aligned batch
    Hp = _ceil_to(H, 128)             # lane-aligned hidden
    Dp = _ceil_to(D, 128)             # lane-aligned input features
    Dm = max(Dp, Hp)                  # common padded input width for all layers
    Op = _ceil_to(O, 128)             # lane-dense output store
    G = 4 * Hp

    # ---- pack / pad parameters (128-aligned gate lane spans) ----
    wih_s, whh_s, b_s = [], [], []
    for layer in layers:
        w_ih = jnp.asarray(layer["w_ih"], jnp.float32)   # (4H, Din)
        w_hh = jnp.asarray(layer["w_hh"], jnp.float32)   # (4H, H)
        bias = (jnp.asarray(layer["b_ih"], jnp.float32)
                + jnp.asarray(layer["b_hh"], jnp.float32)).reshape(1, 4 * H)
        wih_s.append(_pack_gates(w_ih.T, H, Hp, Dm))     # (Dm, G)
        whh_s.append(_pack_gates(w_hh.T, H, Hp, Hp))     # (Hp, G)
        b_s.append(_pack_gates(bias, H, Hp, 1))          # (1, G)
    wih_s = jnp.stack(wih_s)          # (L, Dm, G)
    whh_s = jnp.stack(whh_s)          # (L, Hp, G)
    b_s = jnp.stack(b_s)              # (L, 1, G)

    wfc = jnp.zeros((Hp, Op), jnp.float32).at[:H, :O].set(
        jnp.asarray(params["fc_w"], jnp.float32).T)
    bfc = jnp.zeros((1, Op), jnp.float32).at[0, :O].set(
        jnp.asarray(params["fc_b"], jnp.float32))

    # batch-first -> time-major + pad: a single fused XLA relayout pass
    # (needed anyway for the batch/lane padding).
    x_t = jnp.transpose(x_btd, (1, 0, 2))                                # (T,B,D)
    x_pad = jnp.zeros((T, Bp, Dm), jnp.float32).at[:, :B, :D].set(x_t)
    x_flat = x_pad.reshape(T * Bp, Dm)                                   # (T*Bp,Dm)

    kernel = functools.partial(_fused_lstm_kernel,
                               T=T, Bp=Bp, Hp=Hp, mm_dtype=mm_dtype)

    out_pad = pl.pallas_call(
        kernel,
        out_shape=jax.ShapeDtypeStruct((Bp, Op), jnp.float32),
        grid_spec=pltpu.PrefetchScalarGridSpec(
            num_scalar_prefetch=0,
            grid=(L,),
            in_specs=[
                pl.BlockSpec((T * Bp, Dm), lambda l: (0, 0)),   # fetched once
                pl.BlockSpec((1, Dm, G), lambda l: (l, 0, 0)),  # per-layer W_ih
                pl.BlockSpec((1, Hp, G), lambda l: (l, 0, 0)),  # per-layer W_hh
                pl.BlockSpec((1, 1, G), lambda l: (l, 0, 0)),   # per-layer bias
                pl.BlockSpec((Hp, Op), lambda l: (0, 0)),       # FC weight
                pl.BlockSpec((1, Op), lambda l: (0, 0)),        # FC bias
            ],
            out_specs=pl.BlockSpec((Bp, Op), lambda l: (0, 0)),
            scratch_shapes=[
                pltpu.VMEM((T * Bp, Dm), jnp.float32),   # inter-layer h sequence
                pltpu.VMEM((T * Bp, G), jnp.float32),    # hoisted gate projection
            ],
        ),
        compiler_params=pltpu.CompilerParams(
            dimension_semantics=("arbitrary",),   # layers are sequential
            vmem_limit_bytes=64 * 1024 * 1024,
        ),
    )(x_flat, wih_s, whh_s, b_s, wfc, bfc)

    return out_pad[:B, :O]


# ---------------------------------------------------------------------------
# Deterministic parameter init (PyTorch shapes; uniform(-1/sqrt(H), +1/sqrt(H)))
# ---------------------------------------------------------------------------

def init_params(key, input_dim, hidden_dim, num_layers, output_dim):
    k = 1.0 / math.sqrt(hidden_dim)
    layers = []
    for l in range(num_layers):
        d_in = input_dim if l == 0 else hidden_dim
        key, k1, k2, k3, k4 = jax.random.split(key, 5)
        layers.append(dict(
            w_ih=jax.random.uniform(k1, (4 * hidden_dim, d_in), jnp.float32, -k, k),
            w_hh=jax.random.uniform(k2, (4 * hidden_dim, hidden_dim), jnp.float32, -k, k),
            b_ih=jax.random.uniform(k3, (4 * hidden_dim,), jnp.float32, -k, k),
            b_hh=jax.random.uniform(k4, (4 * hidden_dim,), jnp.float32, -k, k),
        ))
    key, k5, k6 = jax.random.split(key, 3)
    fc_w = jax.random.uniform(k5, (output_dim, hidden_dim), jnp.float32, -k, k)
    fc_b = jax.random.uniform(k6, (output_dim,), jnp.float32, -k, k)
    return dict(lstm=layers, fc_w=fc_w, fc_b=fc_b)


# Pure-JAX reference (same math as torch.nn.LSTM + nn.Linear forward).
# mm_dtype lets us match the kernel's bf16 matmul operands exactly.
def lstm_forward_ref(x_btd, params, mm_dtype=jnp.float32):
    x_btd = jnp.asarray(x_btd, jnp.float32)
    B, T, _ = x_btd.shape

    def mm(a, b):
        return jnp.dot(a.astype(mm_dtype), b.astype(mm_dtype),
                       preferred_element_type=jnp.float32)

    h_seq = jnp.transpose(x_btd, (1, 0, 2))
    for layer in params["lstm"]:
        H = layer["w_hh"].shape[1]
        h = jnp.zeros((B, H), jnp.float32)
        c = jnp.zeros((B, H), jnp.float32)
        outs = []
        for t in range(T):
            g = (mm(h_seq[t], layer["w_ih"].T) + layer["b_ih"]
                 + mm(h, layer["w_hh"].T) + layer["b_hh"])
            i = jax.nn.sigmoid(g[:, 0 * H:1 * H])
            f = jax.nn.sigmoid(g[:, 1 * H:2 * H])
            gg = jnp.tanh(g[:, 2 * H:3 * H])
            o = jax.nn.sigmoid(g[:, 3 * H:4 * H])
            c = f * c + i * gg
            h = o * jnp.tanh(c)
            outs.append(h)
        h_seq = jnp.stack(outs, axis=0)
    return mm(h_seq[-1], params["fc_w"].T) + params["fc_b"]


if __name__ == "__main__":
    B, T, D, H, L, O = 2, 8, 16, 32, 2, 4

    key = jax.random.PRNGKey(0)
    key, xk = jax.random.split(key)
    x = jax.random.normal(xk, (B, T, D), jnp.float32)   # batch-first like PyTorch
    params = init_params(key, D, H, L, O)

    fwd = jax.jit(lstm_forward, static_argnames=("mm_dtype",))
    out = jax.block_until_ready(fwd(x, params))
    assert out.shape == (B, O)

    # Reference with matched bf16 matmul operands (tight) and pure f32 (loose,
    # difference is only the bf16 cast of matmul operands).
    ref_matched = lstm_forward_ref(x, params, mm_dtype=jnp.bfloat16)
    ref_f32 = lstm_forward_ref(x, params, mm_dtype=jnp.float32)

    err_m = float(jnp.max(jnp.abs(out - ref_matched)))
    err_f = float(jnp.max(jnp.abs(out - ref_f32)))
    assert jnp.allclose(out, ref_matched, atol=1e-2, rtol=1e-2), (
        "mismatch vs bf16-matmul reference, max abs err = %g" % err_m)
    assert jnp.allclose(out, ref_f32, atol=5e-2, rtol=5e-2), (
        "mismatch vs f32 reference, max abs err = %g" % err_f)

    print("KERNEL_OK")
</pallas_src>

<mosaic_0001>
module attributes {stable_mosaic.version = 11 : i64} {
  func.func @_fused_lstm_kernel(%arg0: i32, %arg1: memref<64x128xf32, #tpu.memory_space<vmem>>, %arg2: memref<1x128x512xf32, #tpu.memory_space<vmem>>, %arg3: memref<1x128x512xf32, #tpu.memory_space<vmem>>, %arg4: memref<1x1x512xf32, #tpu.memory_space<vmem>>, %arg5: memref<128x128xf32, #tpu.memory_space<vmem>>, %arg6: memref<1x128xf32, #tpu.memory_space<vmem>>, %arg7: memref<8x128xf32, #tpu.memory_space<vmem>>, %arg8: memref<64x128xf32, #tpu.memory_space<vmem>>, %arg9: memref<64x512xf32, #tpu.memory_space<vmem>>) attributes {dimension_semantics = [#tpu.dimension_semantics<arbitrary>], iteration_bounds = array<i64: 2>, scalar_prefetch = 0 : i64, scratch_operands = 2 : i64, tpu.core_type = #tpu.core_type<tc>, window_params = [{pipeline_mode = #tpu.pipeline_mode<synchronous>, transform_indices = @transform_0, window_bounds = array<i64: 64, 128>}, {transform_indices = @transform_1, window_bounds = array<i64: 1, 128, 512>}, {transform_indices = @transform_2, window_bounds = array<i64: 1, 128, 512>}, {transform_indices = @transform_3, window_bounds = array<i64: 1, 1, 512>}, {pipeline_mode = #tpu.pipeline_mode<synchronous>, transform_indices = @transform_4, window_bounds = array<i64: 128, 128>}, {pipeline_mode = #tpu.pipeline_mode<synchronous>, transform_indices = @transform_5, window_bounds = array<i64: 1, 128>}, {pipeline_mode = #tpu.pipeline_mode<synchronous>, transform_indices = @transform_6, window_bounds = array<i64: 8, 128>}]} {
    %c0_i32 = arith.constant 0 : i32
    %0 = arith.cmpi eq, %arg0, %c0_i32 : i32
    %1 = arith.extui %0 : i1 to i32
    %c0_i32_0 = arith.constant 0 : i32
    %2 = arith.cmpi ne, %1, %c0_i32_0 : i32
    scf.if %2 {
      %c0_73 = arith.constant 0 : index
      %c0_74 = arith.constant 0 : index
      %262 = vector.load %arg1[%c0_73, %c0_74] : memref<64x128xf32, #tpu.memory_space<vmem>>, vector<64x128xf32>
      %c0_75 = arith.constant 0 : index
      %c0_76 = arith.constant 0 : index
      %263 = vector.load %arg8[%c0_75, %c0_76] : memref<64x128xf32, #tpu.memory_space<vmem>>, vector<64x128xf32>
      tpu.vector_store %arg8[%c0_75, %c0_76], %262 {strides = array<i32>} : memref<64x128xf32, #tpu.memory_space<vmem>>, vector<64x128xf32>,
    } else {
    }
    %c0 = arith.constant 0 : index
    %c0_1 = arith.constant 0 : index
    %3 = vector.load %arg8[%c0, %c0_1] : memref<64x128xf32, #tpu.memory_space<vmem>>, vector<64x128xf32>
    %4 = arith.truncf %3 : vector<64x128xf32> to vector<64x128xbf16>
    %c0_2 = arith.constant 0 : index
    %c0_3 = arith.constant 0 : index
    %c0_4 = arith.constant 0 : index
    %5 = vector.load %arg2[%c0_2, %c0_3, %c0_4] : memref<1x128x512xf32, #tpu.memory_space<vmem>>, vector<1x128x512xf32>
    %6 = vector.shape_cast %5 : vector<1x128x512xf32> to vector<128x512xf32>
    %7 = arith.truncf %6 : vector<128x512xf32> to vector<128x512xbf16>
    %cst = arith.constant dense<0.000000e+00> : vector<64x512xf32>
    %8 = tpu.matmul %4, %7, %cst {dimension_numbers = #tpu.dot_dimension_numbers<[1], [0], [0], [1], [0, 0, 1, 1], [], []>} : vector<64x128xbf16>, vector<128x512xbf16>, vector<64x512xf32> -> vector<64x512xf32>
    %c0_5 = arith.constant 0 : index
    %c0_6 = arith.constant 0 : index
    %c0_7 = arith.constant 0 : index
    %9 = vector.load %arg4[%c0_5, %c0_6, %c0_7] : memref<1x1x512xf32, #tpu.memory_space<vmem>>, vector<1x1x512xf32>
    %10 = vector.shape_cast %9 : vector<1x1x512xf32> to vector<1x512xf32>
    %11 = vector.broadcast %10 : vector<1x512xf32> to vector<64x512xf32>
    %12 = arith.addf %8, %11 : vector<64x512xf32>
    %c0_8 = arith.constant 0 : index
    %c0_9 = arith.constant 0 : index
    %13 = vector.load %arg9[%c0_8, %c0_9] : memref<64x512xf32, #tpu.memory_space<vmem>>, vector<64x512xf32>
    tpu.vector_store %arg9[%c0_8, %c0_9], %12 {strides = array<i32>} : memref<64x512xf32, #tpu.memory_space<vmem>>, vector<64x512xf32>,
    %c0_10 = arith.constant 0 : index
    %c0_11 = arith.constant 0 : index
    %c0_12 = arith.constant 0 : index
    %14 = vector.load %arg3[%c0_10, %c0_11, %c0_12] : memref<1x128x512xf32, #tpu.memory_space<vmem>>, vector<1x128x512xf32>
    %15 = vector.shape_cast %14 : vector<1x128x512xf32> to vector<128x512xf32>
    %16 = arith.truncf %15 : vector<128x512xf32> to vector<128x512xbf16>
    %cst_13 = arith.constant 0.000000e+00 : f32
    %17 = vector.broadcast %cst_13 : f32 to vector<8x128xf32>
    %cst_14 = arith.constant 0.000000e+00 : f32
    %18 = vector.broadcast %cst_14 : f32 to vector<8x128xf32>
    %c0_15 = arith.constant 0 : index
    %c0_16 = arith.constant 0 : index
    %19 = vector.load %arg9[%c0_15, %c0_16] : memref<64x512xf32, #tpu.memory_space<vmem>>, vector<8x512xf32>
    %20 = arith.truncf %17 : vector<8x128xf32> to vector<8x128xbf16>
    %cst_17 = arith.constant dense<0.000000e+00> : vector<8x512xf32>
    %21 = tpu.matmul %20, %16, %cst_17 {dimension_numbers = #tpu.dot_dimension_numbers<[1], [0], [0], [1], [0, 0, 1, 1], [], []>} : vector<8x128xbf16>, vector<128x512xbf16>, vector<8x512xf32> -> vector<8x512xf32>
    %22 = arith.addf %19, %21 : vector<8x512xf32>
    %23 = vector.extract_strided_slice %22 {offsets = [0, 0], sizes = [8, 128], strides = [1, 1]} : vector<8x512xf32> to vector<8x128xf32>
    %24 = arith.negf %23 : vector<8x128xf32>
    %25 = math.exp %24 : vector<8x128xf32>
    %cst_18 = arith.constant 1.000000e+00 : f32
    %26 = vector.broadcast %cst_18 : f32 to vector<8x128xf32>
    %27 = arith.addf %26, %25 : vector<8x128xf32>
    %28 = arith.divf %26, %27 : vector<8x128xf32>
    %29 = vector.extract_strided_slice %22 {offsets = [0, 128], sizes = [8, 128], strides = [1, 1]} : vector<8x512xf32> to vector<8x128xf32>
    %30 = arith.negf %29 : vector<8x128xf32>
    %31 = math.exp %30 : vector<8x128xf32>
    %cst_19 = arith.constant 1.000000e+00 : f32
    %32 = vector.broadcast %cst_19 : f32 to vector<8x128xf32>
    %33 = arith.addf %32, %31 : vector<8x128xf32>
    %34 = arith.divf %32, %33 : vector<8x128xf32>
    %35 = vector.extract_strided_slice %22 {offsets = [0, 256], sizes = [8, 128], strides = [1, 1]} : vector<8x512xf32> to vector<8x128xf32>
    %36 = math.tanh %35 : vector<8x128xf32>
    %37 = vector.extract_strided_slice %22 {offsets = [0, 384], sizes = [8, 128], strides = [1, 1]} : vector<8x512xf32> to vector<8x128xf32>
    %38 = arith.negf %37 : vector<8x128xf32>
    %39 = math.exp %38 : vector<8x128xf32>
    %cst_20 = arith.constant 1.000000e+00 : f32
    %40 = vector.broadcast %cst_20 : f32 to vector<8x128xf32>
    %41 = arith.addf %40, %39 : vector<8x128xf32>
    %42 = arith.divf %40, %41 : vector<8x128xf32>
    %43 = arith.mulf %34, %18 : vector<8x128xf32>
    %44 = arith.mulf %28, %36 : vector<8x128xf32>
    %45 = arith.addf %43, %44 : vector<8x128xf32>
    %46 = math.tanh %45 : vector<8x128xf32>
    %47 = arith.mulf %42, %46 : vector<8x128xf32>
    %c0_21 = arith.constant 0 : index
    %c0_22 = arith.constant 0 : index
    %48 = vector.load %arg8[%c0_21, %c0_22] : memref<64x128xf32, #tpu.memory_space<vmem>>, vector<8x128xf32>
    tpu.vector_store %arg8[%c0_21, %c0_22], %47 {strides = array<i32>} : memref<64x128xf32, #tpu.memory_space<vmem>>, vector<8x128xf32>,
    %c8 = arith.constant 8 : index
    %c0_23 = arith.constant 0 : index
    %49 = vector.load %arg9[%c8, %c0_23] : memref<64x512xf32, #tpu.memory_space<vmem>>, vector<8x512xf32>
    %50 = arith.truncf %47 : vector<8x128xf32> to vector<8x128xbf16>
    %cst_24 = arith.constant dense<0.000000e+00> : vector<8x512xf32>
    %51 = tpu.matmul %50, %16, %cst_24 {dimension_numbers = #tpu.dot_dimension_numbers<[1], [0], [0], [1], [0, 0, 1, 1], [], []>} : vector<8x128xbf16>, vector<128x512xbf16>, vector<8x512xf32> -> vector<8x512xf32>
    %52 = arith.addf %49, %51 : vector<8x512xf32>
    %53 = vector.extract_strided_slice %52 {offsets = [0, 0], sizes = [8, 128], strides = [1, 1]} : vector<8x512xf32> to vector<8x128xf32>
    %54 = arith.negf %53 : vector<8x128xf32>
    %55 = math.exp %54 : vector<8x128xf32>
    %cst_25 = arith.constant 1.000000e+00 : f32
    %56 = vector.broadcast %cst_25 : f32 to vector<8x128xf32>
    %57 = arith.addf %56, %55 : vector<8x128xf32>
    %58 = arith.divf %56, %57 : vector<8x128xf32>
    %59 = vector.extract_strided_slice %52 {offsets = [0, 128], sizes = [8, 128], strides = [1, 1]} : vector<8x512xf32> to vector<8x128xf32>
    %60 = arith.negf %59 : vector<8x128xf32>
    %61 = math.exp %60 : vector<8x128xf32>
    %cst_26 = arith.constant 1.000000e+00 : f32
    %62 = vector.broadcast %cst_26 : f32 to vector<8x128xf32>
    %63 = arith.addf %62, %61 : vector<8x128xf32>
    %64 = arith.divf %62, %63 : vector<8x128xf32>
    %65 = vector.extract_strided_slice %52 {offsets = [0, 256], sizes = [8, 128], strides = [1, 1]} : vector<8x512xf32> to vector<8x128xf32>
    %66 = math.tanh %65 : vector<8x128xf32>
    %67 = vector.extract_strided_slice %52 {offsets = [0, 384], sizes = [8, 128], strides = [1, 1]} : vector<8x512xf32> to vector<8x128xf32>
    %68 = arith.negf %67 : vector<8x128xf32>
    %69 = math.exp %68 : vector<8x128xf32>
    %cst_27 = arith.constant 1.000000e+00 : f32
    %70 = vector.broadcast %cst_27 : f32 to vector<8x128xf32>
    %71 = arith.addf %70, %69 : vector<8x128xf32>
    %72 = arith.divf %70, %71 : vector<8x128xf32>
    %73 = arith.mulf %64, %45 : vector<8x128xf32>
    %74 = arith.mulf %58, %66 : vector<8x128xf32>
    %75 = arith.addf %73, %74 : vector<8x128xf32>
    %76 = math.tanh %75 : vector<8x128xf32>
    %77 = arith.mulf %72, %76 : vector<8x128xf32>
    %c8_28 = arith.constant 8 : index
    %c0_29 = arith.constant 0 : index
    %78 = vector.load %arg8[%c8_28, %c0_29] : memref<64x128xf32, #tpu.memory_space<vmem>>, vector<8x128xf32>
    tpu.vector_store %arg8[%c8_28, %c0_29], %77 {strides = array<i32>} : memref<64x128xf32, #tpu.memory_space<vmem>>, vector<8x128xf32>,
    %c16 = arith.constant 16 : index
    %c0_30 = arith.constant 0 : index
    %79 = vector.load %arg9[%c16, %c0_30] : memref<64x512xf32, #tpu.memory_space<vmem>>, vector<8x512xf32>
    %80 = arith.truncf %77 : vector<8x128xf32> to vector<8x128xbf16>
    %cst_31 = arith.constant dense<0.000000e+00> : vector<8x512xf32>
    %81 = tpu.matmul %80, %16, %cst_31 {dimension_numbers = #tpu.dot_dimension_numbers<[1], [0], [0], [1], [0, 0, 1, 1], [], []>} : vector<8x128xbf16>, vector<128x512xbf16>, vector<8x512xf32> -> vector<8x512xf32>
    %82 = arith.addf %79, %81 : vector<8x512xf32>
    %83 = vector.extract_strided_slice %82 {offsets = [0, 0], sizes = [8, 128], strides = [1, 1]} : vector<8x512xf32> to vector<8x128xf32>
    %84 = arith.negf %83 : vector<8x128xf32>
    %85 = math.exp %84 : vector<8x128xf32>
    %cst_32 = arith.constant 1.000000e+00 : f32
    %86 = vector.broadcast %cst_32 : f32 to vector<8x128xf32>
    %87 = arith.addf %86, %85 : vector<8x128xf32>
    %88 = arith.divf %86, %87 : vector<8x128xf32>
    %89 = vector.extract_strided_slice %82 {offsets = [0, 128], sizes = [8, 128], strides = [1, 1]} : vector<8x512xf32> to vector<8x128xf32>
    %90 = arith.negf %89 : vector<8x128xf32>
    %91 = math.exp %90 : vector<8x128xf32>
    %cst_33 = arith.constant 1.000000e+00 : f32
    %92 = vector.broadcast %cst_33 : f32 to vector<8x128xf32>
    %93 = arith.addf %92, %91 : vector<8x128xf32>
    %94 = arith.divf %92, %93 : vector<8x128xf32>
    %95 = vector.extract_strided_slice %82 {offsets = [0, 256], sizes = [8, 128], strides = [1, 1]} : vector<8x512xf32> to vector<8x128xf32>
    %96 = math.tanh %95 : vector<8x128xf32>
    %97 = vector.extract_strided_slice %82 {offsets = [0, 384], sizes = [8, 128], strides = [1, 1]} : vector<8x512xf32> to vector<8x128xf32>
    %98 = arith.negf %97 : vector<8x128xf32>
    %99 = math.exp %98 : vector<8x128xf32>
    %cst_34 = arith.constant 1.000000e+00 : f32
    %100 = vector.broadcast %cst_34 : f32 to vector<8x128xf32>
    %101 = arith.addf %100, %99 : vector<8x128xf32>
    %102 = arith.divf %100, %101 : vector<8x128xf32>
    %103 = arith.mulf %94, %75 : vector<8x128xf32>
    %104 = arith.mulf %88, %96 : vector<8x128xf32>
    %105 = arith.addf %103, %104 : vector<8x128xf32>
    %106 = math.tanh %105 : vector<8x128xf32>
    %107 = arith.mulf %102, %106 : vector<8x128xf32>
    %c16_35 = arith.constant 16 : index
    %c0_36 = arith.constant 0 : index
    %108 = vector.load %arg8[%c16_35, %c0_36] : memref<64x128xf32, #tpu.memory_space<vmem>>, vector<8x128xf32>
    tpu.vector_store %arg8[%c16_35, %c0_36], %107 {strides = array<i32>} : memref<64x128xf32, #tpu.memory_space<vmem>>, vector<8x128xf32>,
    %c24 = arith.constant 24 : index
    %c0_37 = arith.constant 0 : index
    %109 = vector.load %arg9[%c24, %c0_37] : memref<64x512xf32, #tpu.memory_space<vmem>>, vector<8x512xf32>
    %110 = arith.truncf %107 : vector<8x128xf32> to vector<8x128xbf16>
    %cst_38 = arith.constant dense<0.000000e+00> : vector<8x512xf32>
    %111 = tpu.matmul %110, %16, %cst_38 {dimension_numbers = #tpu.dot_dimension_numbers<[1], [0], [0], [1], [0, 0, 1, 1], [], []>} : vector<8x128xbf16>, vector<128x512xbf16>, vector<8x512xf32> -> vector<8x512xf32>
    %112 = arith.addf %109, %111 : vector<8x512xf32>
    %113 = vector.extract_strided_slice %112 {offsets = [0, 0], sizes = [8, 128], strides = [1, 1]} : vector<8x512xf32> to vector<8x128xf32>
    %114 = arith.negf %113 : vector<8x128xf32>
    %115 = math.exp %114 : vector<8x128xf32>
    %cst_39 = arith.constant 1.000000e+00 : f32
    %116 = vector.broadcast %cst_39 : f32 to vector<8x128xf32>
    %117 = arith.addf %116, %115 : vector<8x128xf32>
    %118 = arith.divf %116, %117 : vector<8x128xf32>
    %119 = vector.extract_strided_slice %112 {offsets = [0, 128], sizes = [8, 128], strides = [1, 1]} : vector<8x512xf32> to vector<8x128xf32>
    %120 = arith.negf %119 : vector<8x128xf32>
    %121 = math.exp %120 : vector<8x128xf32>
    %cst_40 = arith.constant 1.000000e+00 : f32
    %122 = vector.broadcast %cst_40 : f32 to vector<8x128xf32>
    %123 = arith.addf %122, %121 : vector<8x128xf32>
    %124 = arith.divf %122, %123 : vector<8x128xf32>
    %125 = vector.extract_strided_slice %112 {offsets = [0, 256], sizes = [8, 128], strides = [1, 1]} : vector<8x512xf32> to vector<8x128xf32>
    %126 = math.tanh %125 : vector<8x128xf32>
    %127 = vector.extract_strided_slice %112 {offsets = [0, 384], sizes = [8, 128], strides = [1, 1]} : vector<8x512xf32> to vector<8x128xf32>
    %128 = arith.negf %127 : vector<8x128xf32>
    %129 = math.exp %128 : vector<8x128xf32>
    %cst_41 = arith.constant 1.000000e+00 : f32
    %130 = vector.broadcast %cst_41 : f32 to vector<8x128xf32>
    %131 = arith.addf %130, %129 : vector<8x128xf32>
    %132 = arith.divf %130, %131 : vector<8x128xf32>
    %133 = arith.mulf %124, %105 : vector<8x128xf32>
    %134 = arith.mulf %118, %126 : vector<8x128xf32>
    %135 = arith.addf %133, %134 : vector<8x128xf32>
    %136 = math.tanh %135 : vector<8x128xf32>
    %137 = arith.mulf %132, %136 : vector<8x128xf32>
    %c24_42 = arith.constant 24 : index
    %c0_43 = arith.constant 0 : index
    %138 = vector.load %arg8[%c24_42, %c0_43] : memref<64x128xf32, #tpu.memory_space<vmem>>, vector<8x128xf32>
    tpu.vector_store %arg8[%c24_42, %c0_43], %137 {strides = array<i32>} : memref<64x128xf32, #tpu.memory_space<vmem>>, vector<8x128xf32>,
    %c32 = arith.constant 32 : index
    %c0_44 = arith.constant 0 : index
    %139 = vector.load %arg9[%c32, %c0_44] : memref<64x512xf32, #tpu.memory_space<vmem>>, vector<8x512xf32>
    %140 = arith.truncf %137 : vector<8x128xf32> to vector<8x128xbf16>
    %cst_45 = arith.constant dense<0.000000e+00> : vector<8x512xf32>
    %141 = tpu.matmul %140, %16, %cst_45 {dimension_numbers = #tpu.dot_dimension_numbers<[1], [0], [0], [1], [0, 0, 1, 1], [], []>} : vector<8x128xbf16>, vector<128x512xbf16>, vector<8x512xf32> -> vector<8x512xf32>
    %142 = arith.addf %139, %141 : vector<8x512xf32>
    %143 = vector.extract_strided_slice %142 {offsets = [0, 0], sizes = [8, 128], strides = [1, 1]} : vector<8x512xf32> to vector<8x128xf32>
    %144 = arith.negf %143 : vector<8x128xf32>
    %145 = math.exp %144 : vector<8x128xf32>
    %cst_46 = arith.constant 1.000000e+00 : f32
    %146 = vector.broadcast %cst_46 : f32 to vector<8x128xf32>
    %147 = arith.addf %146, %145 : vector<8x128xf32>
    %148 = arith.divf %146, %147 : vector<8x128xf32>
    %149 = vector.extract_strided_slice %142 {offsets = [0, 128], sizes = [8, 128], strides = [1, 1]} : vector<8x512xf32> to vector<8x128xf32>
    %150 = arith.negf %149 : vector<8x128xf32>
    %151 = math.exp %150 : vector<8x128xf32>
    %cst_47 = arith.constant 1.000000e+00 : f32
    %152 = vector.broadcast %cst_47 : f32 to vector<8x128xf32>
    %153 = arith.addf %152, %151 : vector<8x128xf32>
    %154 = arith.divf %152, %153 : vector<8x128xf32>
    %155 = vector.extract_strided_slice %142 {offsets = [0, 256], sizes = [8, 128], strides = [1, 1]} : vector<8x512xf32> to vector<8x128xf32>
    %156 = math.tanh %155 : vector<8x128xf32>
    %157 = vector.extract_strided_slice %142 {offsets = [0, 384], sizes = [8, 128], strides = [1, 1]} : vector<8x512xf32> to vector<8x128xf32>
    %158 = arith.negf %157 : vector<8x128xf32>
    %159 = math.exp %158 : vector<8x128xf32>
    %cst_48 = arith.constant 1.000000e+00 : f32
    %160 = vector.broadcast %cst_48 : f32 to vector<8x128xf32>
    %161 = arith.addf %160, %159 : vector<8x128xf32>
    %162 = arith.divf %160, %161 : vector<8x128xf32>
    %163 = arith.mulf %154, %135 : vector<8x128xf32>
    %164 = arith.mulf %148, %156 : vector<8x128xf32>
    %165 = arith.addf %163, %164 : vector<8x128xf32>
    %166 = math.tanh %165 : vector<8x128xf32>
    %167 = arith.mulf %162, %166 : vector<8x128xf32>
    %c32_49 = arith.constant 32 : index
    %c0_50 = arith.constant 0 : index
    %168 = vector.load %arg8[%c32_49, %c0_50] : memref<64x128xf32, #tpu.memory_space<vmem>>, vector<8x128xf32>
    tpu.vector_store %arg8[%c32_49, %c0_50], %167 {strides = array<i32>} : memref<64x128xf32, #tpu.memory_space<vmem>>, vector<8x128xf32>,
    %c40 = arith.constant 40 : index
    %c0_51 = arith.constant 0 : index
    %169 = vector.load %arg9[%c40, %c0_51] : memref<64x512xf32, #tpu.memory_space<vmem>>, vector<8x512xf32>
    %170 = arith.truncf %167 : vector<8x128xf32> to vector<8x128xbf16>
    %cst_52 = arith.constant dense<0.000000e+00> : vector<8x512xf32>
    %171 = tpu.matmul %170, %16, %cst_52 {dimension_numbers = #tpu.dot_dimension_numbers<[1], [0], [0], [1], [0, 0, 1, 1], [], []>} : vector<8x128xbf16>, vector<128x512xbf16>, vector<8x512xf32> -> vector<8x512xf32>
    %172 = arith.addf %169, %171 : vector<8x512xf32>
    %173 = vector.extract_strided_slice %172 {offsets = [0, 0], sizes = [8, 128], strides = [1, 1]} : vector<8x512xf32> to vector<8x128xf32>
    %174 = arith.negf %173 : vector<8x128xf32>
    %175 = math.exp %174 : vector<8x128xf32>
    %cst_53 = arith.constant 1.000000e+00 : f32
    %176 = vector.broadcast %cst_53 : f32 to vector<8x128xf32>
    %177 = arith.addf %176, %175 : vector<8x128xf32>
    %178 = arith.divf %176, %177 : vector<8x128xf32>
    %179 = vector.extract_strided_slice %172 {offsets = [0, 128], sizes = [8, 128], strides = [1, 1]} : vector<8x512xf32> to vector<8x128xf32>
    %180 = arith.negf %179 : vector<8x128xf32>
    %181 = math.exp %180 : vector<8x128xf32>
    %cst_54 = arith.constant 1.000000e+00 : f32
    %182 = vector.broadcast %cst_54 : f32 to vector<8x128xf32>
    %183 = arith.addf %182, %181 : vector<8x128xf32>
    %184 = arith.divf %182, %183 : vector<8x128xf32>
    %185 = vector.extract_strided_slice %172 {offsets = [0, 256], sizes = [8, 128], strides = [1, 1]} : vector<8x512xf32> to vector<8x128xf32>
    %186 = math.tanh %185 : vector<8x128xf32>
    %187 = vector.extract_strided_slice %172 {offsets = [0, 384], sizes = [8, 128], strides = [1, 1]} : vector<8x512xf32> to vector<8x128xf32>
    %188 = arith.negf %187 : vector<8x128xf32>
    %189 = math.exp %188 : vector<8x128xf32>
    %cst_55 = arith.constant 1.000000e+00 : f32
    %190 = vector.broadcast %cst_55 : f32 to vector<8x128xf32>
    %191 = arith.addf %190, %189 : vector<8x128xf32>
    %192 = arith.divf %190, %191 : vector<8x128xf32>
    %193 = arith.mulf %184, %165 : vector<8x128xf32>
    %194 = arith.mulf %178, %186 : vector<8x128xf32>
    %195 = arith.addf %193, %194 : vector<8x128xf32>
    %196 = math.tanh %195 : vector<8x128xf32>
    %197 = arith.mulf %192, %196 : vector<8x128xf32>
    %c40_56 = arith.constant 40 : index
    %c0_57 = arith.constant 0 : index
    %198 = vector.load %arg8[%c40_56, %c0_57] : memref<64x128xf32, #tpu.memory_space<vmem>>, vector<8x128xf32>
    tpu.vector_store %arg8[%c40_56, %c0_57], %197 {strides = array<i32>} : memref<64x128xf32, #tpu.memory_space<vmem>>, vector<8x128xf32>,
    %c48 = arith.constant 48 : index
    %c0_58 = arith.constant 0 : index
    %199 = vector.load %arg9[%c48, %c0_58] : memref<64x512xf32, #tpu.memory_space<vmem>>, vector<8x512xf32>
    %200 = arith.truncf %197 : vector<8x128xf32> to vector<8x128xbf16>
    %cst_59 = arith.constant dense<0.000000e+00> : vector<8x512xf32>
    %201 = tpu.matmul %200, %16, %cst_59 {dimension_numbers = #tpu.dot_dimension_numbers<[1], [0], [0], [1], [0, 0, 1, 1], [], []>} : vector<8x128xbf16>, vector<128x512xbf16>, vector<8x512xf32> -> vector<8x512xf32>
    %202 = arith.addf %199, %201 : vector<8x512xf32>
    %203 = vector.extract_strided_slice %202 {offsets = [0, 0], sizes = [8, 128], strides = [1, 1]} : vector<8x512xf32> to vector<8x128xf32>
    %204 = arith.negf %203 : vector<8x128xf32>
    %205 = math.exp %204 : vector<8x128xf32>
    %cst_60 = arith.constant 1.000000e+00 : f32
    %206 = vector.broadcast %cst_60 : f32 to vector<8x128xf32>
    %207 = arith.addf %206, %205 : vector<8x128xf32>
    %208 = arith.divf %206, %207 : vector<8x128xf32>
    %209 = vector.extract_strided_slice %202 {offsets = [0, 128], sizes = [8, 128], strides = [1, 1]} : vector<8x512xf32> to vector<8x128xf32>
    %210 = arith.negf %209 : vector<8x128xf32>
    %211 = math.exp %210 : vector<8x128xf32>
    %cst_61 = arith.constant 1.000000e+00 : f32
    %212 = vector.broadcast %cst_61 : f32 to vector<8x128xf32>
    %213 = arith.addf %212, %211 : vector<8x128xf32>
    %214 = arith.divf %212, %213 : vector<8x128xf32>
    %215 = vector.extract_strided_slice %202 {offsets = [0, 256], sizes = [8, 128], strides = [1, 1]} : vector<8x512xf32> to vector<8x128xf32>
    %216 = math.tanh %215 : vector<8x128xf32>
    %217 = vector.extract_strided_slice %202 {offsets = [0, 384], sizes = [8, 128], strides = [1, 1]} : vector<8x512xf32> to vector<8x128xf32>
    %218 = arith.negf %217 : vector<8x128xf32>
    %219 = math.exp %218 : vector<8x128xf32>
    %cst_62 = arith.constant 1.000000e+00 : f32
    %220 = vector.broadcast %cst_62 : f32 to vector<8x128xf32>
    %221 = arith.addf %220, %219 : vector<8x128xf32>
    %222 = arith.divf %220, %221 : vector<8x128xf32>
    %223 = arith.mulf %214, %195 : vector<8x128xf32>
    %224 = arith.mulf %208, %216 : vector<8x128xf32>
    %225 = arith.addf %223, %224 : vector<8x128xf32>
    %226 = math.tanh %225 : vector<8x128xf32>
    %227 = arith.mulf %222, %226 : vector<8x128xf32>
    %c48_63 = arith.constant 48 : index
    %c0_64 = arith.constant 0 : index
    %228 = vector.load %arg8[%c48_63, %c0_64] : memref<64x128xf32, #tpu.memory_space<vmem>>, vector<8x128xf32>
    tpu.vector_store %arg8[%c48_63, %c0_64], %227 {strides = array<i32>} : memref<64x128xf32, #tpu.memory_space<vmem>>, vector<8x128xf32>,
    %c56 = arith.constant 56 : index
    %c0_65 = arith.constant 0 : index
    %229 = vector.load %arg9[%c56, %c0_65] : memref<64x512xf32, #tpu.memory_space<vmem>>, vector<8x512xf32>
    %230 = arith.truncf %227 : vector<8x128xf32> to vector<8x128xbf16>
    %cst_66 = arith.constant dense<0.000000e+00> : vector<8x512xf32>
    %231 = tpu.matmul %230, %16, %cst_66 {dimension_numbers = #tpu.dot_dimension_numbers<[1], [0], [0], [1], [0, 0, 1, 1], [], []>} : vector<8x128xbf16>, vector<128x512xbf16>, vector<8x512xf32> -> vector<8x512xf32>
    %232 = arith.addf %229, %231 : vector<8x512xf32>
    %233 = vector.extract_strided_slice %232 {offsets = [0, 0], sizes = [8, 128], strides = [1, 1]} : vector<8x512xf32> to vector<8x128xf32>
    %234 = arith.negf %233 : vector<8x128xf32>
    %235 = math.exp %234 : vector<8x128xf32>
    %cst_67 = arith.constant 1.000000e+00 : f32
    %236 = vector.broadcast %cst_67 : f32 to vector<8x128xf32>
    %237 = arith.addf %236, %235 : vector<8x128xf32>
    %238 = arith.divf %236, %237 : vector<8x128xf32>
    %239 = vector.extract_strided_slice %232 {offsets = [0, 128], sizes = [8, 128], strides = [1, 1]} : vector<8x512xf32> to vector<8x128xf32>
    %240 = arith.negf %239 : vector<8x128xf32>
    %241 = math.exp %240 : vector<8x128xf32>
    %cst_68 = arith.constant 1.000000e+00 : f32
    %242 = vector.broadcast %cst_68 : f32 to vector<8x128xf32>
    %243 = arith.addf %242, %241 : vector<8x128xf32>
    %244 = arith.divf %242, %243 : vector<8x128xf32>
    %245 = vector.extract_strided_slice %232 {offsets = [0, 256], sizes = [8, 128], strides = [1, 1]} : vector<8x512xf32> to vector<8x128xf32>
    %246 = math.tanh %245 : vector<8x128xf32>
    %247 = vector.extract_strided_slice %232 {offsets = [0, 384], sizes = [8, 128], strides = [1, 1]} : vector<8x512xf32> to vector<8x128xf32>
    %248 = arith.negf %247 : vector<8x128xf32>
    %249 = math.exp %248 : vector<8x128xf32>
    %cst_69 = arith.constant 1.000000e+00 : f32
    %250 = vector.broadcast %cst_69 : f32 to vector<8x128xf32>
    %251 = arith.addf %250, %249 : vector<8x128xf32>
    %252 = arith.divf %250, %251 : vector<8x128xf32>
    %253 = arith.mulf %244, %225 : vector<8x128xf32>
    %254 = arith.mulf %238, %246 : vector<8x128xf32>
    %255 = arith.addf %253, %254 : vector<8x128xf32>
    %256 = math.tanh %255 : vector<8x128xf32>
    %257 = arith.mulf %252, %256 : vector<8x128xf32>
    %c56_70 = arith.constant 56 : index
    %c0_71 = arith.constant 0 : index
    %258 = vector.load %arg8[%c56_70, %c0_71] : memref<64x128xf32, #tpu.memory_space<vmem>>, vector<8x128xf32>
    tpu.vector_store %arg8[%c56_70, %c0_71], %257 {strides = array<i32>} : memref<64x128xf32, #tpu.memory_space<vmem>>, vector<8x128xf32>,
    %c1_i32 = arith.constant 1 : i32
    %259 = arith.cmpi eq, %arg0, %c1_i32 : i32
    %260 = arith.extui %259 : i1 to i32
    %c0_i32_72 = arith.constant 0 : i32
    %261 = arith.cmpi ne, %260, %c0_i32_72 : i32
    scf.if %261 {
      %262 = arith.truncf %257 : vector<8x128xf32> to vector<8x128xbf16>
      %c0_73 = arith.constant 0 : index
      %c0_74 = arith.constant 0 : index
      %263 = vector.load %arg5[%c0_73, %c0_74] : memref<128x128xf32, #tpu.memory_space<vmem>>, vector<128x128xf32>
      %264 = arith.truncf %263 : vector<128x128xf32> to vector<128x128xbf16>
      %cst_75 = arith.constant dense<0.000000e+00> : vector<8x128xf32>
      %265 = tpu.matmul %262, %264, %cst_75 {dimension_numbers = #tpu.dot_dimension_numbers<[1], [0], [0], [1], [0, 0, 1, 1], [], []>} : vector<8x128xbf16>, vector<128x128xbf16>, vector<8x128xf32> -> vector<8x128xf32>
      %c0_76 = arith.constant 0 : index
      %c0_77 = arith.constant 0 : index
      %266 = vector.load %arg6[%c0_76, %c0_77] : memref<1x128xf32, #tpu.memory_space<vmem>>, vector<1x128xf32>
      %267 = vector.broadcast %266 : vector<1x128xf32> to vector<8x128xf32>
      %268 = arith.addf %265, %267 : vector<8x128xf32>
      %c0_78 = arith.constant 0 : index
      %c0_79 = arith.constant 0 : index
      %269 = vector.load %arg7[%c0_78, %c0_79] : memref<8x128xf32, #tpu.memory_space<vmem>>, vector<8x128xf32>
      tpu.vector_store %arg7[%c0_78, %c0_79], %268 {strides = array<i32>} : memref<8x128xf32, #tpu.memory_space<vmem>>, vector<8x128xf32>,
    } else {
    }
    return
  }
  func.func @transform_0(%arg0: i32) -> (i32, i32) {
    %c0_i32 = arith.constant 0 : i32
    %c0_i32_0 = arith.constant 0 : i32
    %c0_i32_1 = arith.constant 0 : i32
    return %c0_i32, %c0_i32_0 : i32, i32
  }
  func.func @transform_1(%arg0: i32) -> (i32, i32, i32) {
    %c0_i32 = arith.constant 0 : i32
    %c0_i32_0 = arith.constant 0 : i32
    %c0_i32_1 = arith.constant 0 : i32
    return %arg0, %c0_i32, %c0_i32_0 : i32, i32, i32
  }
  func.func @transform_2(%arg0: i32) -> (i32, i32, i32) {
    %c0_i32 = arith.constant 0 : i32
    %c0_i32_0 = arith.constant 0 : i32
    %c0_i32_1 = arith.constant 0 : i32
    return %arg0, %c0_i32, %c0_i32_0 : i32, i32, i32
  }
  func.func @transform_3(%arg0: i32) -> (i32, i32, i32) {
    %c0_i32 = arith.constant 0 : i32
    %c0_i32_0 = arith.constant 0 : i32
    %c0_i32_1 = arith.constant 0 : i32
    return %arg0, %c0_i32, %c0_i32_0 : i32, i32, i32
  }
  func.func @transform_4(%arg0: i32) -> (i32, i32) {
    %c0_i32 = arith.constant 0 : i32
    %c0_i32_0 = arith.constant 0 : i32
    %c0_i32_1 = arith.constant 0 : i32
    return %c0_i32, %c0_i32_0 : i32, i32
  }
  func.func @transform_5(%arg0: i32) -> (i32, i32) {
    %c0_i32 = arith.constant 0 : i32
    %c0_i32_0 = arith.constant 0 : i32
    %c0_i32_1 = arith.constant 0 : i32
    return %c0_i32, %c0_i32_0 : i32, i32
  }
  func.func @transform_6(%arg0: i32) -> (i32, i32) {
    %c0_i32 = arith.constant 0 : i32
    %c0_i32_0 = arith.constant 0 : i32
    %c0_i32_1 = arith.constant 0 : i32
    return %c0_i32, %c0_i32_0 : i32, i32
  }
}

</mosaic_0001>

<llo_original>
// kernel: lstm_forward.1
$region0: #{lstm_forward.1}
  #allocation0 [shape = 'u32[]', space=smem, size = 0x4, offset = 0x4, fixed_abs, tag = 'smem constant byte address 0x4 - core index']
  #allocation1 [shape = 'u32[144,128]{1,0:T(1,128)}', space=vmem, size = 0x12000, scoped, tag = 'internal scratch']
  #allocation2 [shape = 'f32[64,128]{1,0:T(8,128)}', space=vmem, size = 0x8000, scoped, tag = 'scratch operand']
  #allocation3 [shape = 'f32[64,512]{1,0:T(8,128)}', space=vmem, size = 0x20000, scoped, tag = 'scratch operand']
  %s0 = inlined_call_operand.hbm [shape: f32[64,128], index: 0, kind: input, shape index: {}]
  %s1 = inlined_call_operand.hbm [shape: f32[2,128,512], index: 1, kind: input, shape index: {}]
  %s2 = inlined_call_operand.hbm [shape: f32[2,128,512], index: 2, kind: input, shape index: {}]
  %s3 = inlined_call_operand.hbm [shape: f32[2,1,512], index: 3, kind: input, shape index: {}]
  %s4 = inlined_call_operand.hbm [shape: f32[128,128], index: 4, kind: input, shape index: {}]
  %s5 = inlined_call_operand.hbm [shape: f32[1,128], index: 5, kind: input, shape index: {}]
  %s6 = inlined_call_operand.hbm [shape: f32[8,128], index: 6, kind: output, shape index: {}]
  %s7 = sld [smem:[#allocation0]]
  $region89: #{lstm_forward.1} parent=0
    _
  %s9 = ssub.s32 1, %s7
  %s10 = scalar_select 0, %s9, %s7
  $region1: #{lstm_forward.1} parent=0
    #allocation4 [shape = 'u8[32768]{0}', space=vmem, size = 0x8000, scoped, tag = 'input window, operand 0, single buffered']
    #allocation5 [shape = 's32[2]{0}', space=sflag, size = 0x8, scoped, tag = 'scoped memory for lstm_forward.1']
    #allocation6 [shape = 's32[2]{0}', space=sflag, size = 0x8, scoped, tag = 'scoped memory for lstm_forward.1']
    #allocation7 [shape = 'u8[524288]{0}', space=vmem, size = 0x80000, scoped, tag = 'input window, operand 1']
    #allocation8 [shape = 's32[2]{0}', space=sflag, size = 0x8, scoped, tag = 'scoped memory for lstm_forward.1']
    #allocation9 [shape = 'u8[524288]{0}', space=vmem, size = 0x80000, scoped, tag = 'input window, operand 2']
    #allocation10 [shape = 'u8[4096]{0}', space=vmem, size = 0x1000, scoped, tag = 'input window, operand 3']
    #allocation11 [shape = 's32[2]{0}', space=sflag, size = 0x8, scoped, tag = 'scoped memory for lstm_forward.1']
    #allocation12 [shape = 'u8[65536]{0}', space=vmem, size = 0x10000, scoped, tag = 'input window, operand 4, single buffered']
    #allocation13 [shape = 'u8[512]{0}', space=vmem, size = 0x400, scoped, tag = 'input window, operand 5, single buffered']
    #allocation14 [shape = 's32[1]{0}', space=sflag, size = 0x4, scoped, tag = 'scoped memory for lstm_forward.1']
    #allocation15 [shape = 'u8[4096]{0}', space=vmem, size = 0x1000, scoped, tag = 'output window, operand 0, single buffered']
    %11 = vsyncpa [#allocation5], 0
    %12 = vsyncpa [#allocation8], 0
    %s13 = scalar_lea.sflag [#allocation8], 1
    %14 = vsyncpa %s13, 0
    %15 = vsyncpa [#allocation11], 0
    %s16 = scalar_lea.sflag [#allocation11], 1
    %17 = vsyncpa %s16, 0
    %18 = vsyncpa [#allocation14], 0
    %19 = vsyncpa [#allocation6], 0
    loop: start=0, step=1, limit=4
    $region2: #{lstm_forward.1} parent=1 // loop_pre_header
      _
    $region3: #{lstm_forward.1} parent=1 // loop_header
      %s21 = sphi 0, %s25
      %p22 = scmp.ge.s32.totalorder %s21, 4
      %s29 = sphi 0, %s29
      %s31 = sphi 0, %s29
      %s32 = sphi 0, %s31
      %s46 = sphi 0, %s32
      %s52 = sphi 0, %s54
      %s55 = sphi 0, %s52
      %s56 = sphi 0, %s55
      %s72 = sphi 0, %s56
      %s78 = sphi 0, %s80
      %s81 = sphi 0, %s78
      %s82 = sphi 0, %s81
      %s98 = sphi 0, %s82
      %s104 = sphi 0, %s106
      %s107 = sphi 0, %s104
      %s108 = sphi 0, %s107
      %s124 = sphi 0, %s108
      %s128 = sphi 0, %s128
      %s130 = sphi 0, %s128
      %s131 = sphi 0, %s130
      %s145 = sphi 0, %s131
      %s149 = sphi 0, %s149
      %s151 = sphi 0, %s149
      %s152 = sphi 0, %s151
      %s166 = sphi 0, %s152
      %s170 = sphi 0, %s170
      %s172 = sphi 0, %s170
      %s173 = sphi 0, %s172
      %s187 = sphi 0, %s173
    $region4: #{lstm_forward.1} parent=1 // loop_header_branch
      %24 = sbr.rel (%p22) target = $region8
    $region5: #{lstm_forward.1} parent=1 // loop_body
      %s26 = ssub.s32 %s21, 1
      %s27 = ssub.s32 %s21, 2
      %s28 = sadd.s32 %s21, 1
      %s30 = sadd.s32 %s29, 1
      %p33 = scmp.eq.s32.totalorder %s21, 1
      %p34 = scmp.ne.s32.totalorder %s29, %s31
      %p35 = scmp.eq.s32.totalorder %s21, 0
      %p36 = por %p34, %p35
      %p37 = scmp.ne.s32.totalorder %s29, %s31
      %p38 = scmp.eq.s32.totalorder %s26, 1
      %p39 = por %p37, %p38
      %p40 = scmp.ne.s32.totalorder %s31, %s32
      %p41 = scmp.eq.s32.totalorder %s26, 0
      %p42 = por %p40, %p41
      %p43 = scmp.ne.s32.totalorder %s31, %s32
      %p44 = scmp.eq.s32.totalorder %s27, 1
      %p45 = por %p43, %p44
      %p47 = scmp.ne.s32.totalorder %s32, %s46
      %p48 = scmp.eq.s32.totalorder %s27, 0
      %p49 = por %p47, %p48
      %s50 = ssub.s32 %s21, %s28
      %p51 = scmp.eq.s32.totalorder %s50, 0
      %s53 = sadd.s32 %s52, 1
      %s54 = scalar_select %p51, %s52, %s53
      %p57 = pneg %p51
      %p58 = scmp.eq.s32.totalorder %s21, 1
      %p59 = por %p57, %p58
      %p60 = scmp.ne.s32.totalorder %s52, %s55
      %p61 = scmp.eq.s32.totalorder %s21, 0
      %p62 = por %p60, %p61
      %p63 = scmp.ne.s32.totalorder %s52, %s55
      %p64 = scmp.eq.s32.totalorder %s26, 1
      %p65 = por %p63, %p64
      %p66 = scmp.ne.s32.totalorder %s55, %s56
      %p67 = scmp.eq.s32.totalorder %s26, 0
      %p68 = por %p66, %p67
      %p69 = scmp.ne.s32.totalorder %s55, %s56
      %p70 = scmp.eq.s32.totalorder %s27, 1
      %p71 = por %p69, %p70
      %p73 = scmp.ne.s32.totalorder %s56, %s72
      %p74 = scmp.eq.s32.totalorder %s27, 0
      %p75 = por %p73, %p74
      %s76 = ssub.s32 %s21, %s28
      %p77 = scmp.eq.s32.totalorder %s76, 0
      %s79 = sadd.s32 %s78, 1
      %s80 = scalar_select %p77, %s78, %s79
      %p83 = pneg %p77
      %p84 = scmp.eq.s32.totalorder %s21, 1
      %p85 = por %p83, %p84
      %p86 = scmp.ne.s32.totalorder %s78, %s81
      %p87 = scmp.eq.s32.totalorder %s21, 0
      %p88 = por %p86, %p87
      %p89 = scmp.ne.s32.totalorder %s78, %s81
      %p90 = scmp.eq.s32.totalorder %s26, 1
      %p91 = por %p89, %p90
      %p92 = scmp.ne.s32.totalorder %s81, %s82
      %p93 = scmp.eq.s32.totalorder %s26, 0
      %p94 = por %p92, %p93
      %p95 = scmp.ne.s32.totalorder %s81, %s82
      %p96 = scmp.eq.s32.totalorder %s27, 1
      %p97 = por %p95, %p96
      %p99 = scmp.ne.s32.totalorder %s82, %s98
      %p100 = scmp.eq.s32.totalorder %s27, 0
      %p101 = por %p99, %p100
      %s102 = ssub.s32 %s21, %s28
      %p103 = scmp.eq.s32.totalorder %s102, 0
      %s105 = sadd.s32 %s104, 1
      %s106 = scalar_select %p103, %s104, %s105
      %p109 = pneg %p103
      %p110 = scmp.eq.s32.totalorder %s21, 1
      %p111 = por %p109, %p110
      %p112 = scmp.ne.s32.totalorder %s104, %s107
      %p113 = scmp.eq.s32.totalorder %s21, 0
      %p114 = por %p112, %p113
      %p115 = scmp.ne.s32.totalorder %s104, %s107
      %p116 = scmp.eq.s32.totalorder %s26, 1
      %p117 = por %p115, %p116
      %p118 = scmp.ne.s32.totalorder %s107, %s108
      %p119 = scmp.eq.s32.totalorder %s26, 0
      %p120 = por %p118, %p119
      %p121 = scmp.ne.s32.totalorder %s107, %s108
      %p122 = scmp.eq.s32.totalorder %s27, 1
      %p123 = por %p121, %p122
      %p125 = scmp.ne.s32.totalorder %s108, %s124
      %p126 = scmp.eq.s32.totalorder %s27, 0
      %p127 = por %p125, %p126
      %s129 = sadd.s32 %s128, 1
      %p132 = scmp.eq.s32.totalorder %s21, 1
      %p133 = scmp.ne.s32.totalorder %s128, %s130
      %p134 = scmp.eq.s32.totalorder %s21, 0
      %p135 = por %p133, %p134
      %p136 = scmp.ne.s32.totalorder %s128, %s130
      %p137 = scmp.eq.s32.totalorder %s26, 1
      %p138 = por %p136, %p137
      %p139 = scmp.ne.s32.totalorder %s130, %s131
      %p140 = scmp.eq.s32.totalorder %s26, 0
      %p141 = por %p139, %p140
      %p142 = scmp.ne.s32.totalorder %s130, %s131
      %p143 = scmp.eq.s32.totalorder %s27, 1
      %p144 = por %p142, %p143
      %p146 = scmp.ne.s32.totalorder %s131, %s145
      %p147 = scmp.eq.s32.totalorder %s27, 0
      %p148 = por %p146, %p147
      %s150 = sadd.s32 %s149, 1
      %p153 = scmp.eq.s32.totalorder %s21, 1
      %p154 = scmp.ne.s32.totalorder %s149, %s151
      %p155 = scmp.eq.s32.totalorder %s21, 0
      %p156 = por %p154, %p155
      %p157 = scmp.ne.s32.totalorder %s149, %s151
      %p158 = scmp.eq.s32.totalorder %s26, 1
      %p159 = por %p157, %p158
      %p160 = scmp.ne.s32.totalorder %s151, %s152
      %p161 = scmp.eq.s32.totalorder %s26, 0
      %p162 = por %p160, %p161
      %p163 = scmp.ne.s32.totalorder %s151, %s152
      %p164 = scmp.eq.s32.totalorder %s27, 1
      %p165 = por %p163, %p164
      %p167 = scmp.ne.s32.totalorder %s152, %s166
      %p168 = scmp.eq.s32.totalorder %s27, 0
      %p169 = por %p167, %p168
      %s171 = sadd.s32 %s170, 1
      %p174 = scmp.eq.s32.totalorder %s21, 1
      %p175 = scmp.ne.s32.totalorder %s170, %s172
      %p176 = scmp.eq.s32.totalorder %s21, 0
      %p177 = por %p175, %p176
      %p178 = scmp.ne.s32.totalorder %s170, %s172
      %p179 = scmp.eq.s32.totalorder %s26, 1
      %p180 = por %p178, %p179
      %p181 = scmp.ne.s32.totalorder %s172, %s173
      %p182 = scmp.eq.s32.totalorder %s26, 0
      %p183 = por %p181, %p182
      %p184 = scmp.ne.s32.totalorder %s172, %s173
      %p185 = scmp.eq.s32.totalorder %s27, 1
      %p186 = por %p184, %p185
      %p188 = scmp.ne.s32.totalorder %s173, %s187
      %p189 = scmp.eq.s32.totalorder %s27, 0
      %p190 = por %p188, %p189
      %p191 = scmp.le.s32.totalorder 1, %s21
      %p192 = scmp.lt.s32.totalorder %s21, 3
      %p193 = pnand %p191, %p192
      %p194 = pneg %p193
      // Predicated region
      $region9: #{lstm_forward.1} parent=5 // pred_check
        _
      $region10: #{lstm_forward.1} parent=5 // pred_check_branch
        %196 = sbr.rel (%p193) target = $region12
      $region11: #{lstm_forward.1} parent=5 // pred_region
        %s197 = ssub.s32 %s21, 1
        // Predicated region
        $region13: #{lstm_forward.1} parent=11 // pred_check
          %p198 = pneg %p42
        $region14: #{lstm_forward.1} parent=11 // pred_check_branch
          %200 = sbr.rel (%p198) target = $region16
        $region15: #{lstm_forward.1} parent=11 // pred_region
          %s202 = ssub.s32 1024, 1024
          %203 = vsyncadd [#allocation5], %s202
          %s204 = sshll.u32 [#allocation4], 4
          %s205 = int_to_ptr.vmem [resolvable:$true] %s204
          %210 = dma.hbm_to_vmem [thread:$0]  %s0, 1024, %s205, [#allocation5], 128, 128, 8
        $region16: #{lstm_forward.1} parent=11 // pred_fallthru
          _
        // Predicated region
        $region17: #{lstm_forward.1} parent=11 // pred_check
          %p211 = pneg %p141
        $region18: #{lstm_forward.1} parent=11 // pred_check_branch
          %213 = sbr.rel (%p211) target = $region20
        $region19: #{lstm_forward.1} parent=11 // pred_region
          %s215 = ssub.s32 2048, 2048
          %216 = vsyncadd [#allocation11], %s215
          %s217 = sshll.u32 [#allocation12], 4
          %s218 = int_to_ptr.vmem [resolvable:$true] %s217
          %223 = dma.hbm_to_vmem [thread:$0]  %s4, 2048, %s218, [#allocation11], 128, 128, 8
        $region20: #{lstm_forward.1} parent=11 // pred_fallthru
          _
        // Predicated region
        $region21: #{lstm_forward.1} parent=11 // pred_check
          %p224 = pneg %p162
        $region22: #{lstm_forward.1} parent=11 // pred_check_branch
          %226 = sbr.rel (%p224) target = $region24
        $region23: #{lstm_forward.1} parent=11 // pred_region
          %s228 = ssub.s32 16, 16
          %229 = vsyncadd [#allocation14], %s228
          %s231 = sshll.u32 [#allocation13], 4
          %s232 = int_to_ptr.vmem [resolvable:$true] %s231
          %234 = dma.hbm_to_vmem [thread:$0]  %s5, 16, %s232, [#allocation14]
        $region24: #{lstm_forward.1} parent=11 // pred_fallthru
          _
      $region12: #{lstm_forward.1} parent=5 // pred_fallthru
        _
      %p235 = scmp.lt.s32.totalorder %s21, 2
      // Predicated region
      $region25: #{lstm_forward.1} parent=5 // pred_check
        %p236 = pneg %p235
      $region26: #{lstm_forward.1} parent=5 // pred_check_branch
        %238 = sbr.rel (%p236) target = $region28
      $region27: #{lstm_forward.1} parent=5 // pred_region
        // Predicated region
        $region29: #{lstm_forward.1} parent=27 // pred_check
          %p239 = pneg %p62
        $region30: #{lstm_forward.1} parent=27 // pred_check_branch
          %241 = sbr.rel (%p239) target = $region32
        $region31: #{lstm_forward.1} parent=27 // pred_region
          %s242 = sand.u32 %s21, 1
          %s243 = scalar_lea.sflag [#allocation8], %s242
          %s244 = sand.u32 %s52, 1
          %s245 = smul.addr %s244, 512
          %s246 = scalar_lea.vmem [#allocation7], %s245
          %s248 = ssub.s32 8192, 8192
          %249 = vsyncadd %s243, %s248
          %s250 = smul.addr %s21, 64
          %s251 = smul.addr %s250, 128
          %s252 = scalar_lea.hbm %s1, %s251
          %s253 = sshll.u32 %s246, 4
          %s254 = int_to_ptr.vmem [resolvable:$true] %s253
          %259 = dma.hbm_to_vmem [thread:$0]  %s252, 8192, %s254, %s243, 512, 512, 32
        $region32: #{lstm_forward.1} parent=27 // pred_fallthru
          _
        // Predicated region
        $region33: #{lstm_forward.1} parent=27 // pred_check
          %p260 = pneg %p88
        $region34: #{lstm_forward.1} parent=27 // pred_check_branch
          %262 = sbr.rel (%p260) target = $region36
        $region35: #{lstm_forward.1} parent=27 // pred_region
          %s263 = sand.u32 %s21, 1
          %s264 = scalar_lea.sflag [#allocation8], %s263
          %s265 = sand.u32 %s78, 1
          %s266 = smul.addr %s265, 512
          %s267 = scalar_lea.vmem [#allocation9], %s266
          %s269 = ssub.s32 8192, 8192
          %270 = vsyncadd %s264, %s269
          %s271 = smul.addr %s21, 64
          %s272 = smul.addr %s271, 128
          %s273 = scalar_lea.hbm %s2, %s272
          %s274 = sshll.u32 %s267, 4
          %s275 = int_to_ptr.vmem [resolvable:$true] %s274
          %280 = dma.hbm_to_vmem [thread:$0]  %s273, 8192, %s275, %s264, 512, 512, 32
        $region36: #{lstm_forward.1} parent=27 // pred_fallthru
          _
        // Predicated region
        $region37: #{lstm_forward.1} parent=27 // pred_check
          %p281 = pneg %p114
        $region38: #{lstm_forward.1} parent=27 // pred_check_branch
          %283 = sbr.rel (%p281) target = $region40
        $region39: #{lstm_forward.1} parent=27 // pred_region
          %s284 = sand.u32 %s21, 1
          %s285 = scalar_lea.sflag [#allocation11], %s284
          %s286 = sand.u32 %s104, 1
          %s287 = smul.addr %s286, 4
          %s288 = scalar_lea.vmem [#allocation10], %s287
          %s290 = ssub.s32 64, 64
          %291 = vsyncadd %s285, %s290
          %s292 = smul.addr %s21, 4
          %s293 = smul.addr %s292, 16
          %s294 = scalar_lea.hbm %s3, %s293
          %s296 = sshll.u32 %s288, 4
          %s297 = int_to_ptr.vmem [resolvable:$true] %s296
          %299 = dma.hbm_to_vmem [thread:$0]  %s294, 64, %s297, %s285
        $region40: #{lstm_forward.1} parent=27 // pred_fallthru
          _
      $region28: #{lstm_forward.1} parent=5 // pred_fallthru
        _
      %p300 = scmp.le.s32.totalorder 1, %s21
      %p301 = scmp.lt.s32.totalorder %s21, 3
      %p302 = pnand %p300, %p301
      %p303 = pneg %p302
      // Predicated region
      $region41: #{lstm_forward.1} parent=5 // pred_check
        _
      $region42: #{lstm_forward.1} parent=5 // pred_check_branch
        %305 = sbr.rel (%p302) target = $region44
      $region43: #{lstm_forward.1} parent=5 // pred_region
        %s306 = ssub.s32 %s21, 1
        // Predicated region
        $region45: #{lstm_forward.1} parent=43 // pred_check
          %p307 = pneg %p42
        $region46: #{lstm_forward.1} parent=43 // pred_check_branch
          %309 = sbr.rel (%p307) target = $region48
        $region47: #{lstm_forward.1} parent=43 // pred_region
          %310 = dma.done [#allocation5], 1024
        $region48: #{lstm_forward.1} parent=43 // pred_fallthru
          _
        %s311 = sand.u32 %s26, 1
        %s312 = scalar_lea.sflag [#allocation8], %s311
        %s313 = sand.u32 %s55, 1
        %s314 = smul.addr %s313, 512
        %s315 = scalar_lea.vmem [#allocation7], %s314
        // Predicated region
        $region49: #{lstm_forward.1} parent=43 // pred_check
          %p316 = pneg %p68
        $region50: #{lstm_forward.1} parent=43 // pred_check_branch
          %318 = sbr.rel (%p316) target = $region52
        $region51: #{lstm_forward.1} parent=43 // pred_region
          %319 = dma.done %s312, 8192
        $region52: #{lstm_forward.1} parent=43 // pred_fallthru
          _
        %s320 = sand.u32 %s26, 1
        %s321 = scalar_lea.sflag [#allocation8], %s320
        %s322 = sand.u32 %s81, 1
        %s323 = smul.addr %s322, 512
        %s324 = scalar_lea.vmem [#allocation9], %s323
        // Predicated region
        $region53: #{lstm_forward.1} parent=43 // pred_check
          %p325 = pneg %p94
        $region54: #{lstm_forward.1} parent=43 // pred_check_branch
          %327 = sbr.rel (%p325) target = $region56
        $region55: #{lstm_forward.1} parent=43 // pred_region
          %328 = dma.done %s321, 8192
        $region56: #{lstm_forward.1} parent=43 // pred_fallthru
          _
        %s329 = sand.u32 %s26, 1
        %s330 = scalar_lea.sflag [#allocation11], %s329
        %s331 = sand.u32 %s107, 1
        %s332 = smul.addr %s331, 4
        %s333 = scalar_lea.vmem [#allocation10], %s332
        // Predicated region
        $region57: #{lstm_forward.1} parent=43 // pred_check
          %p334 = pneg %p120
        $region58: #{lstm_forward.1} parent=43 // pred_check_branch
          %336 = sbr.rel (%p334) target = $region60
        $region59: #{lstm_forward.1} parent=43 // pred_region
          %337 = dma.done %s330, 64
        $region60: #{lstm_forward.1} parent=43 // pred_fallthru
          _
        // Predicated region
        $region61: #{lstm_forward.1} parent=43 // pred_check
          %p338 = pneg %p141
        $region62: #{lstm_forward.1} parent=43 // pred_check_branch
          %340 = sbr.rel (%p338) target = $region64
        $region63: #{lstm_forward.1} parent=43 // pred_region
          %341 = dma.done [#allocation11], 2048
        $region64: #{lstm_forward.1} parent=43 // pred_fallthru
          _
        // Predicated region
        $region65: #{lstm_forward.1} parent=43 // pred_check
          %p342 = pneg %p162
        $region66: #{lstm_forward.1} parent=43 // pred_check_branch
          %344 = sbr.rel (%p342) target = $region68
        $region67: #{lstm_forward.1} parent=43 // pred_region
          %345 = dma.done [#allocation14], 16
        $region68: #{lstm_forward.1} parent=43 // pred_fallthru
          _
        %p346 = pneg %p42
        %p347 = pneg %p39
        %s348 = sand.u32 %s26, 1
        %s349 = scalar_lea.sflag [#allocation8], %s348
        %s350 = sand.u32 %s55, 1
        %s351 = smul.addr %s350, 512
        %s352 = scalar_lea.vmem [#allocation7], %s351
        %p353 = pneg %p68
        %p354 = pneg %p65
        %s355 = sand.u32 %s26, 1
        %s356 = scalar_lea.sflag [#allocation8], %s355
        %s357 = sand.u32 %s81, 1
        %s358 = smul.addr %s357, 512
        %s359 = scalar_lea.vmem [#allocation9], %s358
        %p360 = pneg %p94
        %p361 = pneg %p91
        %s362 = sand.u32 %s26, 1
        %s363 = scalar_lea.sflag [#allocation11], %s362
        %s364 = sand.u32 %s107, 1
        %s365 = smul.addr %s364, 4
        %s366 = scalar_lea.vmem [#allocation10], %s365
        %p367 = pneg %p120
        %p368 = pneg %p117
        %p369 = pneg %p141
        %p370 = pneg %p138
        %p371 = pneg %p162
        %p372 = pneg %p159
        %p373 = pneg %p183
        %p374 = pneg %p180
        %p376 = scmp.eq.s32.totalorder %s26, 0
        // Predicated region
        $region69: #{lstm_forward.1} parent=43 // pred_check
          %p377 = pneg %p376
        $region70: #{lstm_forward.1} parent=43 // pred_check_branch
          %379 = sbr.rel (%p377) target = $region72
        $region71: #{lstm_forward.1} parent=43 // pred_region
          %v380 = vld [vmem:[#allocation4] sm:$0xff]
          %v381 = vld [vmem:[#allocation4 + $0x8] sm:$0xff]
          %v382 = vld [vmem:[#allocation4 + $0x10] sm:$0xff]
          %v383 = vld [vmem:[#allocation4 + $0x18] sm:$0xff]
          %v384 = vld [vmem:[#allocation4 + $0x20] sm:$0xff]
          %v385 = vld [vmem:[#allocation4 + $0x28] sm:$0xff]
          %v386 = vld [vmem:[#allocation4 + $0x30] sm:$0xff]
          %v387 = vld [vmem:[#allocation4 + $0x38] sm:$0xff]
          %388 = vst [vmem:[#allocation2] sm:$0xff] %v380
          %389 = vst [vmem:[#allocation2 + $0x8] sm:$0xff] %v381
          %390 = vst [vmem:[#allocation2 + $0x10] sm:$0xff] %v382
          %391 = vst [vmem:[#allocation2 + $0x18] sm:$0xff] %v383
          %392 = vst [vmem:[#allocation2 + $0x20] sm:$0xff] %v384
          %393 = vst [vmem:[#allocation2 + $0x28] sm:$0xff] %v385
          %394 = vst [vmem:[#allocation2 + $0x30] sm:$0xff] %v386
          %395 = vst [vmem:[#allocation2 + $0x38] sm:$0xff] %v387
        $region72: #{lstm_forward.1} parent=43 // pred_fallthru
          _
        %v396 = vld [vmem:[#allocation2] sm:$0xff]
        %v397 = vld [vmem:[#allocation2 + $0x8] sm:$0xff]
        %v398 = vld [vmem:[#allocation2 + $0x10] sm:$0xff]
        %v399 = vld [vmem:[#allocation2 + $0x18] sm:$0xff]
        %v400 = vld [vmem:[#allocation2 + $0x20] sm:$0xff]
        %v401 = vld [vmem:[#allocation2 + $0x28] sm:$0xff]
        %v402 = vld [vmem:[#allocation2 + $0x30] sm:$0xff]
        %v403 = vld [vmem:[#allocation2 + $0x38] sm:$0xff]
        %v404 = vpack.c.bf16 %v397, %v396
        %v405 = vpack.c.bf16 %v399, %v398
        %v406 = vpack.c.bf16 %v401, %v400
        %v407 = vpack.c.bf16 %v403, %v402
        %v408 = vld [vmem:[%s315] sm:$0xff]
        %v409 = vld [vmem:[%s315 + $0x8] sm:$0xff]
        %v410 = vld [vmem:[%s315 + $0x10] sm:$0xff]
        %v411 = vld [vmem:[%s315 + $0x18] sm:$0xff]
        %v412 = vld [vmem:[%s315 + $0x20] sm:$0xff]
        %v413 = vld [vmem:[%s315 + $0x28] sm:$0xff]
        %v414 = vld [vmem:[%s315 + $0x30] sm:$0xff]
        %v415 = vld [vmem:[%s315 + $0x38] sm:$0xff]
        %v416 = vld [vmem:[%s315 + $0x40] sm:$0xff]
        %v417 = vld [vmem:[%s315 + $0x48] sm:$0xff]
        %v418 = vld [vmem:[%s315 + $0x50] sm:$0xff]
        %v419 = vld [vmem:[%s315 + $0x58] sm:$0xff]
        %v420 = vld [vmem:[%s315 + $0x60] sm:$0xff]
        %v421 = vld [vmem:[%s315 + $0x68] sm:$0xff]
        %v422 = vld [vmem:[%s315 + $0x70] sm:$0xff]
        %v423 = vld [vmem:[%s315 + $0x78] sm:$0xff]
        %v424 = vld [vmem:[%s315 + $0x80] sm:$0xff]
        %v425 = vld [vmem:[%s315 + $0x88] sm:$0xff]
        %v426 = vld [vmem:[%s315 + $0x90] sm:$0xff]
        %v427 = vld [vmem:[%s315 + $0x98] sm:$0xff]
        %v428 = vld [vmem:[%s315 + $0xa0] sm:$0xff]
        %v429 = vld [vmem:[%s315 + $0xa8] sm:$0xff]
        %v430 = vld [vmem:[%s315 + $0xb0] sm:$0xff]
        %v431 = vld [vmem:[%s315 + $0xb8] sm:$0xff]
        %v432 = vld [vmem:[%s315 + $0xc0] sm:$0xff]
        %v433 = vld [vmem:[%s315 + $0xc8] sm:$0xff]
        %v434 = vld [vmem:[%s315 + $0xd0] sm:$0xff]
        %v435 = vld [vmem:[%s315 + $0xd8] sm:$0xff]
        %v436 = vld [vmem:[%s315 + $0xe0] sm:$0xff]
        %v437 = vld [vmem:[%s315 + $0xe8] sm:$0xff]
        %v438 = vld [vmem:[%s315 + $0xf0] sm:$0xff]
        %v439 = vld [vmem:[%s315 + $0xf8] sm:$0xff]
        %v440 = vld [vmem:[%s315 + $0x100] sm:$0xff]
        %v441 = vld [vmem:[%s315 + $0x108] sm:$0xff]
        %v442 = vld [vmem:[%s315 + $0x110] sm:$0xff]
        %v443 = vld [vmem:[%s315 + $0x118] sm:$0xff]
        %v444 = vld [vmem:[%s315 + $0x120] sm:$0xff]
        %v445 = vld [vmem:[%s315 + $0x128] sm:$0xff]
        %v446 = vld [vmem:[%s315 + $0x130] sm:$0xff]
        %v447 = vld [vmem:[%s315 + $0x138] sm:$0xff]
        %v448 = vld [vmem:[%s315 + $0x140] sm:$0xff]
        %v449 = vld [vmem:[%s315 + $0x148] sm:$0xff]
        %v450 = vld [vmem:[%s315 + $0x150] sm:$0xff]
        %v451 = vld [vmem:[%s315 + $0x158] sm:$0xff]
        %v452 = vld [vmem:[%s315 + $0x160] sm:$0xff]
        %v453 = vld [vmem:[%s315 + $0x168] sm:$0xff]
        %v454 = vld [vmem:[%s315 + $0x170] sm:$0xff]
        %v455 = vld [vmem:[%s315 + $0x178] sm:$0xff]
        %v456 = vld [vmem:[%s315 + $0x180] sm:$0xff]
        %v457 = vld [vmem:[%s315 + $0x188] sm:$0xff]
        %v458 = vld [vmem:[%s315 + $0x190] sm:$0xff]
        %v459 = vld [vmem:[%s315 + $0x198] sm:$0xff]
        %v460 = vld [vmem:[%s315 + $0x1a0] sm:$0xff]
        %v461 = vld [vmem:[%s315 + $0x1a8] sm:$0xff]
        %v462 = vld [vmem:[%s315 + $0x1b0] sm:$0xff]
        %v463 = vld [vmem:[%s315 + $0x1b8] sm:$0xff]
        %v464 = vld [vmem:[%s315 + $0x1c0] sm:$0xff]
        %v465 = vld [vmem:[%s315 + $0x1c8] sm:$0xff]
        %v466 = vld [vmem:[%s315 + $0x1d0] sm:$0xff]
        %v467 = vld [vmem:[%s315 + $0x1d8] sm:$0xff]
        %v468 = vld [vmem:[%s315 + $0x1e0] sm:$0xff]
        %v469 = vld [vmem:[%s315 + $0x1e8] sm:$0xff]
        %v470 = vld [vmem:[%s315 + $0x1f0] sm:$0xff]
        %v471 = vld [vmem:[%s315 + $0x1f8] sm:$0xff]
        %v472 = vpack.c.bf16 %v412, %v408
        %v473 = vpack.c.bf16 %v413, %v409
        %v474 = vpack.c.bf16 %v414, %v410
        %v475 = vpack.c.bf16 %v415, %v411
        %v476 = vpack.c.bf16 %v420, %v416
        %v477 = vpack.c.bf16 %v421, %v417
        %v478 = vpack.c.bf16 %v422, %v418
        %v479 = vpack.c.bf16 %v423, %v419
        %v480 = vpack.c.bf16 %v428, %v424
        %v481 = vpack.c.bf16 %v429, %v425
        %v482 = vpack.c.bf16 %v430, %v426
        %v483 = vpack.c.bf16 %v431, %v427
        %v484 = vpack.c.bf16 %v436, %v432
        %v485 = vpack.c.bf16 %v437, %v433
        %v486 = vpack.c.bf16 %v438, %v434
        %v487 = vpack.c.bf16 %v439, %v435
        %v488 = vpack.c.bf16 %v444, %v440
        %v489 = vpack.c.bf16 %v445, %v441
        %v490 = vpack.c.bf16 %v446, %v442
        %v491 = vpack.c.bf16 %v447, %v443
        %v492 = vpack.c.bf16 %v452, %v448
        %v493 = vpack.c.bf16 %v453, %v449
        %v494 = vpack.c.bf16 %v454, %v450
        %v495 = vpack.c.bf16 %v455, %v451
        %v496 = vpack.c.bf16 %v460, %v456
        %v497 = vpack.c.bf16 %v461, %v457
        %v498 = vpack.c.bf16 %v462, %v458
        %v499 = vpack.c.bf16 %v463, %v459
        %v500 = vpack.c.bf16 %v468, %v464
        %v501 = vpack.c.bf16 %v469, %v465
        %v502 = vpack.c.bf16 %v470, %v466
        %v503 = vpack.c.bf16 %v471, %v467
        %v504 = vld [vmem:[%s333] sm:$0xf]
        %v506 = vlaneseq
        %v507 = vshrl.u32 %v506, 7
        %v508 = vsub.s32 0, %v507
        %v509 = vrot.slane %v504, %v508
        %v510 = vlaneseq
        %v511 = vshrl.u32 %v510, 7
        %v512 = vsub.s32 1, %v511
        %v513 = vrot.slane %v504, %v512
        %v514 = vlaneseq
        %v515 = vshrl.u32 %v514, 7
        %v516 = vsub.s32 2, %v515
        %v517 = vrot.slane %v504, %v516
        %v518 = vlaneseq
        %v519 = vshrl.u32 %v518, 7
        %v520 = vsub.s32 3, %v519
        %v521 = vrot.slane %v504, %v520
        %526 = vmatprep.subr.bf16.mxu0 %v473
        %527 = vmatpush1.bf16.msra.mxu0 %v472
        %528 = vmatprep.subr.bf16.mxu0 %v477
        %529 = vmatpush1.bf16.msra.mxu0 %v476
        %530 = vmatprep.subr.bf16.mxu0 %v481
        %531 = vmatpush1.bf16.msra.mxu0 %v480
        %532 = vmatprep.subr.bf16.mxu0 %v485
        %533 = vmatpush1.bf16.msra.mxu0 %v484
        %534 = vmatprep.subr.bf16.mxu0 %v489
        %535 = vmatpush1.bf16.msra.mxu0 %v488
        %536 = vmatprep.subr.bf16.mxu0 %v493
        %537 = vmatpush1.bf16.msra.mxu0 %v492
        %538 = vmatprep.subr.bf16.mxu0 %v497
        %539 = vmatpush1.bf16.msra.mxu0 %v496
        %540 = vmatprep.subr.bf16.mxu0 %v501
        %541 = vmatpush1.bf16.msra.mxu0 %v500
        %542 = vmatprep.subr.bf16.mxu0 0
        %543 = vmatpush1.bf16.msra.mxu0 0
        %544 = vmatprep.subr.bf16.mxu0 0
        %545 = vmatpush1.bf16.msra.mxu0 0
        %546 = vmatprep.subr.bf16.mxu0 0
        %547 = vmatpush1.bf16.msra.mxu0 0
        %548 = vmatprep.subr.bf16.mxu0 0
        %549 = vmatpush1.bf16.msra.mxu0 0
        %550 = vmatprep.subr.bf16.mxu0 0
        %551 = vmatpush1.bf16.msra.mxu0 0
        %552 = vmatprep.subr.bf16.mxu0 0
        %553 = vmatpush1.bf16.msra.mxu0 0
        %554 = vmatprep.subr.bf16.mxu0 0
        %555 = vmatpush1.bf16.msra.mxu0 0
        %556 = vmatprep.subr.bf16.mxu0 0
        %557 = vmatpush1.bf16.msra.mxu0 0
        %558 = vmatprep.mubr.bf16.mxu0 0
        %559 = vmatmul.mubr.bf16.gmra.mrb[0].mxu0 %v404
        %v560 = vpop.f32.mrb[0].mxu0
        %v561 = vadd.f32 %v509, %v560
        %v562 = vpop.f32.mrb[0].mxu0
        %v563 = vadd.f32 %v513, %v562
        %v564 = vpop.f32.mrb[0].mxu0
        %v565 = vadd.f32 %v509, %v564
        %v566 = vpop.f32.mrb[0].mxu0
        %v567 = vadd.f32 %v513, %v566
        %568 = vmatprep.mubr.bf16.mxu0 0
        %569 = vmatmul.mubr.bf16.gmra.mrb[0].mxu0 %v405
        %v570 = vpop.f32.mrb[0].mxu0
        %v571 = vadd.f32 %v509, %v570
        %v572 = vpop.f32.mrb[0].mxu0
        %v573 = vadd.f32 %v513, %v572
        %v574 = vpop.f32.mrb[0].mxu0
        %v575 = vadd.f32 %v509, %v574
        %v576 = vpop.f32.mrb[0].mxu0
        %v577 = vadd.f32 %v513, %v576
        %578 = vmatprep.mubr.bf16.mxu0 0
        %579 = vmatmul.mubr.bf16.gmra.mrb[0].mxu0 %v406
        %v580 = vpop.f32.mrb[0].mxu0
        %v581 = vadd.f32 %v509, %v580
        %v582 = vpop.f32.mrb[0].mxu0
        %v583 = vadd.f32 %v513, %v582
        %v584 = vpop.f32.mrb[0].mxu0
        %v585 = vadd.f32 %v509, %v584
        %v586 = vpop.f32.mrb[0].mxu0
        %v587 = vadd.f32 %v513, %v586
        %588 = vmatprep.mubr.bf16.mxu0 0
        %589 = vmatmul.mubr.bf16.gmra.mrb[0].mxu0 %v407
        %v590 = vpop.f32.mrb[0].mxu0
        %v591 = vadd.f32 %v509, %v590
        %v592 = vpop.f32.mrb[0].mxu0
        %v593 = vadd.f32 %v513, %v592
        %v594 = vpop.f32.mrb[0].mxu0
        %v595 = vadd.f32 %v509, %v594
        %v596 = vpop.f32.mrb[0].mxu0
        %v597 = vadd.f32 %v513, %v596
        %598 = vdwg.mxu0
        %599 = vmatprep.subr.bf16.mxu0 %v475
        %600 = vmatpush1.bf16.msra.mxu0 %v474
        %601 = vmatprep.subr.bf16.mxu0 %v479
        %602 = vmatpush1.bf16.msra.mxu0 %v478
        %603 = vmatprep.subr.bf16.mxu0 %v483
        %604 = vmatpush1.bf16.msra.mxu0 %v482
        %605 = vmatprep.subr.bf16.mxu0 %v487
        %606 = vmatpush1.bf16.msra.mxu0 %v486
        %607 = vmatprep.subr.bf16.mxu0 %v491
        %608 = vmatpush1.bf16.msra.mxu0 %v490
        %609 = vmatprep.subr.bf16.mxu0 %v495
        %610 = vmatpush1.bf16.msra.mxu0 %v494
        %611 = vmatprep.subr.bf16.mxu0 %v499
        %612 = vmatpush1.bf16.msra.mxu0 %v498
        %613 = vmatprep.subr.bf16.mxu0 %v503
        %614 = vmatpush1.bf16.msra.mxu0 %v502
        %615 = vmatprep.subr.bf16.mxu0 0
        %616 = vmatpush1.bf16.msra.mxu0 0
        %617 = vmatprep.subr.bf16.mxu0 0
        %618 = vmatpush1.bf16.msra.mxu0 0
        %619 = vmatprep.subr.bf16.mxu0 0
        %620 = vmatpush1.bf16.msra.mxu0 0
        %621 = vmatprep.subr.bf16.mxu0 0
        %622 = vmatpush1.bf16.msra.mxu0 0
        %623 = vmatprep.subr.bf16.mxu0 0
        %624 = vmatpush1.bf16.msra.mxu0 0
        %625 = vmatprep.subr.bf16.mxu0 0
        %626 = vmatpush1.bf16.msra.mxu0 0
        %627 = vmatprep.subr.bf16.mxu0 0
        %628 = vmatpush1.bf16.msra.mxu0 0
        %629 = vmatprep.subr.bf16.mxu0 0
        %630 = vmatpush1.bf16.msra.mxu0 0
        %631 = vmatprep.mubr.bf16.mxu0 0
        %632 = vmatmul.mubr.bf16.gmra.mrb[0].mxu0 %v404
        %v633 = vpop.f32.mrb[0].mxu0
        %v634 = vadd.f32 %v517, %v633
        %v635 = vpop.f32.mrb[0].mxu0
        %v636 = vadd.f32 %v521, %v635
        %v637 = vpop.f32.mrb[0].mxu0
        %v638 = vadd.f32 %v517, %v637
        %v639 = vpop.f32.mrb[0].mxu0
        %v640 = vadd.f32 %v521, %v639
        %641 = vmatprep.mubr.bf16.mxu0 0
        %642 = vmatmul.mubr.bf16.gmra.mrb[0].mxu0 %v405
        %v643 = vpop.f32.mrb[0].mxu0
        %v644 = vadd.f32 %v517, %v643
        %v645 = vpop.f32.mrb[0].mxu0
        %v646 = vadd.f32 %v521, %v645
        %v647 = vpop.f32.mrb[0].mxu0
        %v648 = vadd.f32 %v517, %v647
        %v649 = vpop.f32.mrb[0].mxu0
        %v650 = vadd.f32 %v521, %v649
        %651 = vmatprep.mubr.bf16.mxu0 0
        %652 = vmatmul.mubr.bf16.gmra.mrb[0].mxu0 %v406
        %v653 = vpop.f32.mrb[0].mxu0
        %v654 = vadd.f32 %v517, %v653
        %v655 = vpop.f32.mrb[0].mxu0
        %v656 = vadd.f32 %v521, %v655
        %v657 = vpop.f32.mrb[0].mxu0
        %v658 = vadd.f32 %v517, %v657
        %v659 = vpop.f32.mrb[0].mxu0
        %v660 = vadd.f32 %v521, %v659
        %661 = vmatprep.mubr.bf16.mxu0 0
        %662 = vmatmul.mubr.bf16.gmra.mrb[0].mxu0 %v407
        %v663 = vpop.f32.mrb[0].mxu0
        %v664 = vadd.f32 %v517, %v663
        %v665 = vpop.f32.mrb[0].mxu0
        %v666 = vadd.f32 %v521, %v665
        %v667 = vpop.f32.mrb[0].mxu0
        %v668 = vadd.f32 %v517, %v667
        %v669 = vpop.f32.mrb[0].mxu0
        %v670 = vadd.f32 %v521, %v669
        %671 = vdwg.mxu0
        %672 = vst [vmem:[#allocation3] sm:$0xff] %v561
        %673 = vst [vmem:[#allocation3 + $0x8] sm:$0xff] %v563
        %674 = vst [vmem:[#allocation3 + $0x10] sm:$0xff] %v634
        %675 = vst [vmem:[#allocation3 + $0x18] sm:$0xff] %v636
        %676 = vst [vmem:[#allocation3 + $0x20] sm:$0xff] %v565
        %677 = vst [vmem:[#allocation3 + $0x28] sm:$0xff] %v567
        %678 = vst [vmem:[#allocation3 + $0x30] sm:$0xff] %v638
        %679 = vst [vmem:[#allocation3 + $0x38] sm:$0xff] %v640
        %680 = vst [vmem:[#allocation3 + $0x40] sm:$0xff] %v571
        %681 = vst [vmem:[#allocation3 + $0x48] sm:$0xff] %v573
        %682 = vst [vmem:[#allocation3 + $0x50] sm:$0xff] %v644
        %683 = vst [vmem:[#allocation3 + $0x58] sm:$0xff] %v646
        %684 = vst [vmem:[#allocation3 + $0x60] sm:$0xff] %v575
        %685 = vst [vmem:[#allocation3 + $0x68] sm:$0xff] %v577
        %686 = vst [vmem:[#allocation3 + $0x70] sm:$0xff] %v648
        %687 = vst [vmem:[#allocation3 + $0x78] sm:$0xff] %v650
        %688 = vst [vmem:[#allocation3 + $0x80] sm:$0xff] %v581
        %689 = vst [vmem:[#allocation3 + $0x88] sm:$0xff] %v583
        %690 = vst [vmem:[#allocation3 + $0x90] sm:$0xff] %v654
        %691 = vst [vmem:[#allocation3 + $0x98] sm:$0xff] %v656
        %692 = vst [vmem:[#allocation3 + $0xa0] sm:$0xff] %v585
        %693 = vst [vmem:[#allocation3 + $0xa8] sm:$0xff] %v587
        %694 = vst [vmem:[#allocation3 + $0xb0] sm:$0xff] %v658
        %695 = vst [vmem:[#allocation3 + $0xb8] sm:$0xff] %v660
        %696 = vst [vmem:[#allocation3 + $0xc0] sm:$0xff] %v591
        %697 = vst [vmem:[#allocation3 + $0xc8] sm:$0xff] %v593
        %698 = vst [vmem:[#allocation3 + $0xd0] sm:$0xff] %v664
        %699 = vst [vmem:[#allocation3 + $0xd8] sm:$0xff] %v666
        %700 = vst [vmem:[#allocation3 + $0xe0] sm:$0xff] %v595
        %701 = vst [vmem:[#allocation3 + $0xe8] sm:$0xff] %v597
        %702 = vst [vmem:[#allocation3 + $0xf0] sm:$0xff] %v668
        %703 = vst [vmem:[#allocation3 + $0xf8] sm:$0xff] %v670
        %v704 = vld [vmem:[%s324] sm:$0xff]
        %v705 = vld [vmem:[%s324 + $0x8] sm:$0xff]
        %v706 = vld [vmem:[%s324 + $0x10] sm:$0xff]
        %v707 = vld [vmem:[%s324 + $0x18] sm:$0xff]
        %v708 = vld [vmem:[%s324 + $0x20] sm:$0xff]
        %v709 = vld [vmem:[%s324 + $0x28] sm:$0xff]
        %v710 = vld [vmem:[%s324 + $0x30] sm:$0xff]
        %v711 = vld [vmem:[%s324 + $0x38] sm:$0xff]
        %v712 = vld [vmem:[%s324 + $0x40] sm:$0xff]
        %v713 = vld [vmem:[%s324 + $0x48] sm:$0xff]
        %v714 = vld [vmem:[%s324 + $0x50] sm:$0xff]
        %v715 = vld [vmem:[%s324 + $0x58] sm:$0xff]
        %v716 = vld [vmem:[%s324 + $0x60] sm:$0xff]
        %v717 = vld [vmem:[%s324 + $0x68] sm:$0xff]
        %v718 = vld [vmem:[%s324 + $0x70] sm:$0xff]
        %v719 = vld [vmem:[%s324 + $0x78] sm:$0xff]
        %v720 = vld [vmem:[%s324 + $0x80] sm:$0xff]
        %v721 = vld [vmem:[%s324 + $0x88] sm:$0xff]
        %v722 = vld [vmem:[%s324 + $0x90] sm:$0xff]
        %v723 = vld [vmem:[%s324 + $0x98] sm:$0xff]
        %v724 = vld [vmem:[%s324 + $0xa0] sm:$0xff]
        %v725 = vld [vmem:[%s324 + $0xa8] sm:$0xff]
        %v726 = vld [vmem:[%s324 + $0xb0] sm:$0xff]
        %v727 = vld [vmem:[%s324 + $0xb8] sm:$0xff]
        %v728 = vld [vmem:[%s324 + $0xc0] sm:$0xff]
        %v729 = vld [vmem:[%s324 + $0xc8] sm:$0xff]
        %v730 = vld [vmem:[%s324 + $0xd0] sm:$0xff]
        %v731 = vld [vmem:[%s324 + $0xd8] sm:$0xff]
        %v732 = vld [vmem:[%s324 + $0xe0] sm:$0xff]
        %v733 = vld [vmem:[%s324 + $0xe8] sm:$0xff]
        %v734 = vld [vmem:[%s324 + $0xf0] sm:$0xff]
        %v735 = vld [vmem:[%s324 + $0xf8] sm:$0xff]
        %v736 = vld [vmem:[%s324 + $0x100] sm:$0xff]
        %v737 = vld [vmem:[%s324 + $0x108] sm:$0xff]
        %v738 = vld [vmem:[%s324 + $0x110] sm:$0xff]
        %v739 = vld [vmem:[%s324 + $0x118] sm:$0xff]
        %v740 = vld [vmem:[%s324 + $0x120] sm:$0xff]
        %v741 = vld [vmem:[%s324 + $0x128] sm:$0xff]
        %v742 = vld [vmem:[%s324 + $0x130] sm:$0xff]
        %v743 = vld [vmem:[%s324 + $0x138] sm:$0xff]
        %v744 = vld [vmem:[%s324 + $0x140] sm:$0xff]
        %v745 = vld [vmem:[%s324 + $0x148] sm:$0xff]
        %v746 = vld [vmem:[%s324 + $0x150] sm:$0xff]
        %v747 = vld [vmem:[%s324 + $0x158] sm:$0xff]
        %v748 = vld [vmem:[%s324 + $0x160] sm:$0xff]
        %v749 = vld [vmem:[%s324 + $0x168] sm:$0xff]
        %v750 = vld [vmem:[%s324 + $0x170] sm:$0xff]
        %v751 = vld [vmem:[%s324 + $0x178] sm:$0xff]
        %v752 = vld [vmem:[%s324 + $0x180] sm:$0xff]
        %v753 = vld [vmem:[%s324 + $0x188] sm:$0xff]
        %v754 = vld [vmem:[%s324 + $0x190] sm:$0xff]
        %v755 = vld [vmem:[%s324 + $0x198] sm:$0xff]
        %v756 = vld [vmem:[%s324 + $0x1a0] sm:$0xff]
        %v757 = vld [vmem:[%s324 + $0x1a8] sm:$0xff]
        %v758 = vld [vmem:[%s324 + $0x1b0] sm:$0xff]
        %v759 = vld [vmem:[%s324 + $0x1b8] sm:$0xff]
        %v760 = vld [vmem:[%s324 + $0x1c0] sm:$0xff]
        %v761 = vld [vmem:[%s324 + $0x1c8] sm:$0xff]
        %v762 = vld [vmem:[%s324 + $0x1d0] sm:$0xff]
        %v763 = vld [vmem:[%s324 + $0x1d8] sm:$0xff]
        %v764 = vld [vmem:[%s324 + $0x1e0] sm:$0xff]
        %v765 = vld [vmem:[%s324 + $0x1e8] sm:$0xff]
        %v766 = vld [vmem:[%s324 + $0x1f0] sm:$0xff]
        %v767 = vld [vmem:[%s324 + $0x1f8] sm:$0xff]
        %v768 = vpack.c.bf16 %v708, %v704
        %v769 = vpack.c.bf16 %v709, %v705
        %v770 = vpack.c.bf16 %v710, %v706
        %v771 = vpack.c.bf16 %v711, %v707
        %v772 = vpack.c.bf16 %v716, %v712
        %v773 = vpack.c.bf16 %v717, %v713
        %v774 = vpack.c.bf16 %v718, %v714
        %v775 = vpack.c.bf16 %v719, %v715
        %v776 = vpack.c.bf16 %v724, %v720
        %v777 = vpack.c.bf16 %v725, %v721
        %v778 = vpack.c.bf16 %v726, %v722
        %v779 = vpack.c.bf16 %v727, %v723
        %v780 = vpack.c.bf16 %v732, %v728
        %v781 = vpack.c.bf16 %v733, %v729
        %v782 = vpack.c.bf16 %v734, %v730
        %v783 = vpack.c.bf16 %v735, %v731
        %v784 = vpack.c.bf16 %v740, %v736
        %v785 = vpack.c.bf16 %v741, %v737
        %v786 = vpack.c.bf16 %v742, %v738
        %v787 = vpack.c.bf16 %v743, %v739
        %v788 = vpack.c.bf16 %v748, %v744
        %v789 = vpack.c.bf16 %v749, %v745
        %v790 = vpack.c.bf16 %v750, %v746
        %v791 = vpack.c.bf16 %v751, %v747
        %v792 = vpack.c.bf16 %v756, %v752
        %v793 = vpack.c.bf16 %v757, %v753
        %v794 = vpack.c.bf16 %v758, %v754
        %v795 = vpack.c.bf16 %v759, %v755
        %v796 = vpack.c.bf16 %v764, %v760
        %v797 = vpack.c.bf16 %v765, %v761
        %v798 = vpack.c.bf16 %v766, %v762
        %v799 = vpack.c.bf16 %v767, %v763
        %v800 = vld [vmem:[#allocation3] sm:$0xff]
        %v801 = vld [vmem:[#allocation3 + $0x8] sm:$0xff]
        %v802 = vld [vmem:[#allocation3 + $0x10] sm:$0xff]
        %v803 = vld [vmem:[#allocation3 + $0x18] sm:$0xff]
        %804 = vmatprep.subr.bf16.mxu0 %v769
        %805 = vmatpush1.bf16.msra.mxu0 %v768
        %806 = vmatprep.subr.bf16.mxu0 %v773
        %807 = vmatpush1.bf16.msra.mxu0 %v772
        %808 = vmatprep.subr.bf16.mxu0 %v777
        %809 = vmatpush1.bf16.msra.mxu0 %v776
        %810 = vmatprep.subr.bf16.mxu0 %v781
        %811 = vmatpush1.bf16.msra.mxu0 %v780
        %812 = vmatprep.subr.bf16.mxu0 %v785
        %813 = vmatpush1.bf16.msra.mxu0 %v784
        %814 = vmatprep.subr.bf16.mxu0 %v789
        %815 = vmatpush1.bf16.msra.mxu0 %v788
        %816 = vmatprep.subr.bf16.mxu0 %v793
        %817 = vmatpush1.bf16.msra.mxu0 %v792
        %818 = vmatprep.subr.bf16.mxu0 %v797
        %819 = vmatpush1.bf16.msra.mxu0 %v796
        %820 = vmatprep.subr.bf16.mxu0 0
        %821 = vmatpush1.bf16.msra.mxu0 0
        %822 = vmatprep.subr.bf16.mxu0 0
        %823 = vmatpush1.bf16.msra.mxu0 0
        %824 = vmatprep.subr.bf16.mxu0 0
        %825 = vmatpush1.bf16.msra.mxu0 0
        %826 = vmatprep.subr.bf16.mxu0 0
        %827 = vmatpush1.bf16.msra.mxu0 0
        %828 = vmatprep.subr.bf16.mxu0 0
        %829 = vmatpush1.bf16.msra.mxu0 0
        %830 = vmatprep.subr.bf16.mxu0 0
        %831 = vmatpush1.bf16.msra.mxu0 0
        %832 = vmatprep.subr.bf16.mxu0 0
        %833 = vmatpush1.bf16.msra.mxu0 0
        %834 = vmatprep.subr.bf16.mxu0 0
        %835 = vmatpush1.bf16.msra.mxu0 0
        %836 = vmatprep.mubr.bf16.mxu0 0
        %837 = vmatmul.mubr.bf16.gmra.mrb[0].mxu0 0
        %v838 = vpop.f32.mrb[0].mxu0
        %v839 = vadd.f32 0.0, %v838
        %v840 = vpop.f32.mrb[0].mxu0
        %v841 = vadd.f32 0.0, %v840
        %v842 = vpop.f32.mrb[0].mxu0
        %v843 = vpop.f32.mrb[0].mxu0
        %844 = vdwg.mxu0
        %845 = vmatprep.subr.bf16.mxu0 %v771
        %846 = vmatpush1.bf16.msra.mxu0 %v770
        %847 = vmatprep.subr.bf16.mxu0 %v775
        %848 = vmatpush1.bf16.msra.mxu0 %v774
        %849 = vmatprep.subr.bf16.mxu0 %v779
        %850 = vmatpush1.bf16.msra.mxu0 %v778
        %851 = vmatprep.subr.bf16.mxu0 %v783
        %852 = vmatpush1.bf16.msra.mxu0 %v782
        %853 = vmatprep.subr.bf16.mxu0 %v787
        %854 = vmatpush1.bf16.msra.mxu0 %v786
        %855 = vmatprep.subr.bf16.mxu0 %v791
        %856 = vmatpush1.bf16.msra.mxu0 %v790
        %857 = vmatprep.subr.bf16.mxu0 %v795
        %858 = vmatpush1.bf16.msra.mxu0 %v794
        %859 = vmatprep.subr.bf16.mxu0 %v799
        %860 = vmatpush1.bf16.msra.mxu0 %v798
        %861 = vmatprep.subr.bf16.mxu0 0
        %862 = vmatpush1.bf16.msra.mxu0 0
        %863 = vmatprep.subr.bf16.mxu0 0
        %864 = vmatpush1.bf16.msra.mxu0 0
        %865 = vmatprep.subr.bf16.mxu0 0
        %866 = vmatpush1.bf16.msra.mxu0 0
        %867 = vmatprep.subr.bf16.mxu0 0
        %868 = vmatpush1.bf16.msra.mxu0 0
        %869 = vmatprep.subr.bf16.mxu0 0
        %870 = vmatpush1.bf16.msra.mxu0 0
        %871 = vmatprep.subr.bf16.mxu0 0
        %872 = vmatpush1.bf16.msra.mxu0 0
        %873 = vmatprep.subr.bf16.mxu0 0
        %874 = vmatpush1.bf16.msra.mxu0 0
        %875 = vmatprep.subr.bf16.mxu0 0
        %876 = vmatpush1.bf16.msra.mxu0 0
        %877 = vmatprep.mubr.bf16.mxu0 0
        %878 = vmatmul.mubr.bf16.gmra.mrb[0].mxu0 0
        %v879 = vpop.f32.mrb[0].mxu0
        %v880 = vadd.f32 0.0, %v879
        %v881 = vpop.f32.mrb[0].mxu0
        %v882 = vadd.f32 0.0, %v881
        %v883 = vpop.f32.mrb[0].mxu0
        %v884 = vpop.f32.mrb[0].mxu0
        %885 = vdwg.mxu0
        %v886 = vadd.f32 %v800, %v839
        %v887 = vadd.f32 %v801, %v841
        %v888 = vadd.f32 %v802, %v880
        %v889 = vadd.f32 %v803, %v882
        %v890 = vxor.u32 %v886, 2147483648
        %v891 = vmul.f32 %v890, 1.442695
        %v892 = vpow.pop %v891
        %v893 = vadd.f32 %v892, 1.0
        %v894 = vrcp.pop %v893
        %v895 = vmul.f32 1.0, %v894
        %v896 = vxor.u32 %v887, 2147483648
        %v897 = vmul.f32 %v896, 1.442695
        %v898 = vpow.pop %v897
        %v899 = vadd.f32 %v898, 1.0
        %v900 = vrcp.pop %v899
        %v901 = vmul.f32 1.0, %v900
        %v902 = vtanh.pop %v888
        %v903 = vxor.u32 %v889, 2147483648
        %v904 = vmul.f32 %v903, 1.442695
        %v905 = vpow.pop %v904
        %v906 = vadd.f32 %v905, 1.0
        %v907 = vrcp.pop %v906
        %v908 = vmul.f32 1.0, %v907
        %v909 = vmul.f32 %v901, 0.0
        %v910 = vmul.f32 %v895, %v902
        %v911 = vadd.f32 %v909, %v910
        %v912 = vtanh.pop %v911
        %v913 = vmul.f32 %v908, %v912
        %914 = vst [vmem:[#allocation2] sm:$0xff] %v913
        %v915 = vld [vmem:[#allocation3 + $0x20] sm:$0xff]
        %v916 = vld [vmem:[#allocation3 + $0x28] sm:$0xff]
        %v917 = vld [vmem:[#allocation3 + $0x30] sm:$0xff]
        %v918 = vld [vmem:[#allocation3 + $0x38] sm:$0xff]
        %v919 = vpack.c.bf16 %v913, %v913
        %920 = vmatprep.subr.bf16.mxu0 %v769
        %921 = vmatpush1.bf16.msra.mxu0 %v768
        %922 = vmatprep.subr.bf16.mxu0 %v773
        %923 = vmatpush1.bf16.msra.mxu0 %v772
        %924 = vmatprep.subr.bf16.mxu0 %v777
        %925 = vmatpush1.bf16.msra.mxu0 %v776
        %926 = vmatprep.subr.bf16.mxu0 %v781
        %927 = vmatpush1.bf16.msra.mxu0 %v780
        %928 = vmatprep.subr.bf16.mxu0 %v785
        %929 = vmatpush1.bf16.msra.mxu0 %v784
        %930 = vmatprep.subr.bf16.mxu0 %v789
        %931 = vmatpush1.bf16.msra.mxu0 %v788
        %932 = vmatprep.subr.bf16.mxu0 %v793
        %933 = vmatpush1.bf16.msra.mxu0 %v792
        %934 = vmatprep.subr.bf16.mxu0 %v797
        %935 = vmatpush1.bf16.msra.mxu0 %v796
        %936 = vmatprep.subr.bf16.mxu0 0
        %937 = vmatpush1.bf16.msra.mxu0 0
        %938 = vmatprep.subr.bf16.mxu0 0
        %939 = vmatpush1.bf16.msra.mxu0 0
        %940 = vmatprep.subr.bf16.mxu0 0
        %941 = vmatpush1.bf16.msra.mxu0 0
        %942 = vmatprep.subr.bf16.mxu0 0
        %943 = vmatpush1.bf16.msra.mxu0 0
        %944 = vmatprep.subr.bf16.mxu0 0
        %945 = vmatpush1.bf16.msra.mxu0 0
        %946 = vmatprep.subr.bf16.mxu0 0
        %947 = vmatpush1.bf16.msra.mxu0 0
        %948 = vmatprep.subr.bf16.mxu0 0
        %949 = vmatpush1.bf16.msra.mxu0 0
        %950 = vmatprep.subr.bf16.mxu0 0
        %951 = vmatpush1.bf16.msra.mxu0 0
        %952 = vmatprep.mubr.bf16.mxu0 0
        %953 = vmatmul.mubr.bf16.gmra.mrb[0].mxu0 %v919
        %v954 = vpop.f32.mrb[0].mxu0
        %v955 = vadd.f32 0.0, %v954
        %v956 = vpop.f32.mrb[0].mxu0
        %v957 = vadd.f32 0.0, %v956
        %v958 = vpop.f32.mrb[0].mxu0
        %v959 = vpop.f32.mrb[0].mxu0
        %960 = vdwg.mxu0
        %961 = vmatprep.subr.bf16.mxu0 %v771
        %962 = vmatpush1.bf16.msra.mxu0 %v770
        %963 = vmatprep.subr.bf16.mxu0 %v775
        %964 = vmatpush1.bf16.msra.mxu0 %v774
        %965 = vmatprep.subr.bf16.mxu0 %v779
        %966 = vmatpush1.bf16.msra.mxu0 %v778
        %967 = vmatprep.subr.bf16.mxu0 %v783
        %968 = vmatpush1.bf16.msra.mxu0 %v782
        %969 = vmatprep.subr.bf16.mxu0 %v787
        %970 = vmatpush1.bf16.msra.mxu0 %v786
        %971 = vmatprep.subr.bf16.mxu0 %v791
        %972 = vmatpush1.bf16.msra.mxu0 %v790
        %973 = vmatprep.subr.bf16.mxu0 %v795
        %974 = vmatpush1.bf16.msra.mxu0 %v794
        %975 = vmatprep.subr.bf16.mxu0 %v799
        %976 = vmatpush1.bf16.msra.mxu0 %v798
        %977 = vmatprep.subr.bf16.mxu0 0
        %978 = vmatpush1.bf16.msra.mxu0 0
        %979 = vmatprep.subr.bf16.mxu0 0
        %980 = vmatpush1.bf16.msra.mxu0 0
        %981 = vmatprep.subr.bf16.mxu0 0
        %982 = vmatpush1.bf16.msra.mxu0 0
        %983 = vmatprep.subr.bf16.mxu0 0
        %984 = vmatpush1.bf16.msra.mxu0 0
        %985 = vmatprep.subr.bf16.mxu0 0
        %986 = vmatpush1.bf16.msra.mxu0 0
        %987 = vmatprep.subr.bf16.mxu0 0
        %988 = vmatpush1.bf16.msra.mxu0 0
        %989 = vmatprep.subr.bf16.mxu0 0
        %990 = vmatpush1.bf16.msra.mxu0 0
        %991 = vmatprep.subr.bf16.mxu0 0
        %992 = vmatpush1.bf16.msra.mxu0 0
        %993 = vmatprep.mubr.bf16.mxu0 0
        %994 = vmatmul.mubr.bf16.gmra.mrb[0].mxu0 %v919
        %v995 = vpop.f32.mrb[0].mxu0
        %v996 = vadd.f32 0.0, %v995
        %v997 = vpop.f32.mrb[0].mxu0
        %v998 = vadd.f32 0.0, %v997
        %v999 = vpop.f32.mrb[0].mxu0
        %v1000 = vpop.f32.mrb[0].mxu0
        %1001 = vdwg.mxu0
        %v1002 = vadd.f32 %v915, %v955
        %v1003 = vadd.f32 %v916, %v957
        %v1004 = vadd.f32 %v917, %v996
        %v1005 = vadd.f32 %v918, %v998
        %v1006 = vxor.u32 %v1002, 2147483648
        %v1007 = vmul.f32 %v1006, 1.442695
        %v1008 = vpow.pop %v1007
        %v1009 = vadd.f32 %v1008, 1.0
        %v1010 = vrcp.pop %v1009
        %v1011 = vmul.f32 1.0, %v1010
        %v1012 = vxor.u32 %v1003, 2147483648
        %v1013 = vmul.f32 %v1012, 1.442695
        %v1014 = vpow.pop %v1013
        %v1015 = vadd.f32 %v1014, 1.0
        %v1016 = vrcp.pop %v1015
        %v1017 = vmul.f32 1.0, %v1016
        %v1018 = vtanh.pop %v1004
        %v1019 = vxor.u32 %v1005, 2147483648
        %v1020 = vmul.f32 %v1019, 1.442695
        %v1021 = vpow.pop %v1020
        %v1022 = vadd.f32 %v1021, 1.0
        %v1023 = vrcp.pop %v1022
        %v1024 = vmul.f32 1.0, %v1023
        %v1025 = vmul.f32 %v1017, %v911
        %v1026 = vmul.f32 %v1011, %v1018
        %v1027 = vadd.f32 %v1025, %v1026
        %v1028 = vtanh.pop %v1027
        %v1029 = vmul.f32 %v1024, %v1028
        %1030 = vst [vmem:[#allocation2 + $0x8] sm:$0xff] %v1029
        %v1031 = vld [vmem:[#allocation3 + $0x40] sm:$0xff]
        %v1032 = vld [vmem:[#allocation3 + $0x48] sm:$0xff]
        %v1033 = vld [vmem:[#allocation3 + $0x50] sm:$0xff]
        %v1034 = vld [vmem:[#allocation3 + $0x58] sm:$0xff]
        %v1035 = vpack.c.bf16 %v1029, %v1029
        %1036 = vmatprep.subr.bf16.mxu0 %v769
        %1037 = vmatpush1.bf16.msra.mxu0 %v768
        %1038 = vmatprep.subr.bf16.mxu0 %v773
        %1039 = vmatpush1.bf16.msra.mxu0 %v772
        %1040 = vmatprep.subr.bf16.mxu0 %v777
        %1041 = vmatpush1.bf16.msra.mxu0 %v776
        %1042 = vmatprep.subr.bf16.mxu0 %v781
        %1043 = vmatpush1.bf16.msra.mxu0 %v780
        %1044 = vmatprep.subr.bf16.mxu0 %v785
        %1045 = vmatpush1.bf16.msra.mxu0 %v784
        %1046 = vmatprep.subr.bf16.mxu0 %v789
        %1047 = vmatpush1.bf16.msra.mxu0 %v788
        %1048 = vmatprep.subr.bf16.mxu0 %v793
        %1049 = vmatpush1.bf16.msra.mxu0 %v792
        %1050 = vmatprep.subr.bf16.mxu0 %v797
        %1051 = vmatpush1.bf16.msra.mxu0 %v796
        %1052 = vmatprep.subr.bf16.mxu0 0
        %1053 = vmatpush1.bf16.msra.mxu0 0
        %1054 = vmatprep.subr.bf16.mxu0 0
        %1055 = vmatpush1.bf16.msra.mxu0 0
        %1056 = vmatprep.subr.bf16.mxu0 0
        %1057 = vmatpush1.bf16.msra.mxu0 0
        %1058 = vmatprep.subr.bf16.mxu0 0
        %1059 = vmatpush1.bf16.msra.mxu0 0
        %1060 = vmatprep.subr.bf16.mxu0 0
        %1061 = vmatpush1.bf16.msra.mxu0 0
        %1062 = vmatprep.subr.bf16.mxu0 0
        %1063 = vmatpush1.bf16.msra.mxu0 0
        %1064 = vmatprep.subr.bf16.mxu0 0
        %1065 = vmatpush1.bf16.msra.mxu0 0
        %1066 = vmatprep.subr.bf16.mxu0 0
        %1067 = vmatpush1.bf16.msra.mxu0 0
        %1068 = vmatprep.mubr.bf16.mxu0 0
        %1069 = vmatmul.mubr.bf16.gmra.mrb[0].mxu0 %v1035
        %v1070 = vpop.f32.mrb[0].mxu0
        %v1071 = vadd.f32 0.0, %v1070
        %v1072 = vpop.f32.mrb[0].mxu0
        %v1073 = vadd.f32 0.0, %v1072
        %v1074 = vpop.f32.mrb[0].mxu0
        %v1075 = vpop.f32.mrb[0].mxu0
        %1076 = vdwg.mxu0
        %1077 = vmatprep.subr.bf16.mxu0 %v771
        %1078 = vmatpush1.bf16.msra.mxu0 %v770
        %1079 = vmatprep.subr.bf16.mxu0 %v775
        %1080 = vmatpush1.bf16.msra.mxu0 %v774
        %1081 = vmatprep.subr.bf16.mxu0 %v779
        %1082 = vmatpush1.bf16.msra.mxu0 %v778
        %1083 = vmatprep.subr.bf16.mxu0 %v783
        %1084 = vmatpush1.bf16.msra.mxu0 %v782
        %1085 = vmatprep.subr.bf16.mxu0 %v787
        %1086 = vmatpush1.bf16.msra.mxu0 %v786
        %1087 = vmatprep.subr.bf16.mxu0 %v791
        %1088 = vmatpush1.bf16.msra.mxu0 %v790
        %1089 = vmatprep.subr.bf16.mxu0 %v795
        %1090 = vmatpush1.bf16.msra.mxu0 %v794
        %1091 = vmatprep.subr.bf16.mxu0 %v799
        %1092 = vmatpush1.bf16.msra.mxu0 %v798
        %1093 = vmatprep.subr.bf16.mxu0 0
        %1094 = vmatpush1.bf16.msra.mxu0 0
        %1095 = vmatprep.subr.bf16.mxu0 0
        %1096 = vmatpush1.bf16.msra.mxu0 0
        %1097 = vmatprep.subr.bf16.mxu0 0
        %1098 = vmatpush1.bf16.msra.mxu0 0
        %1099 = vmatprep.subr.bf16.mxu0 0
        %1100 = vmatpush1.bf16.msra.mxu0 0
        %1101 = vmatprep.subr.bf16.mxu0 0
        %1102 = vmatpush1.bf16.msra.mxu0 0
        %1103 = vmatprep.subr.bf16.mxu0 0
        %1104 = vmatpush1.bf16.msra.mxu0 0
        %1105 = vmatprep.subr.bf16.mxu0 0
        %1106 = vmatpush1.bf16.msra.mxu0 0
        %1107 = vmatprep.subr.bf16.mxu0 0
        %1108 = vmatpush1.bf16.msra.mxu0 0
        %1109 = vmatprep.mubr.bf16.mxu0 0
        %1110 = vmatmul.mubr.bf16.gmra.mrb[0].mxu0 %v1035
        %v1111 = vpop.f32.mrb[0].mxu0
        %v1112 = vadd.f32 0.0, %v1111
        %v1113 = vpop.f32.mrb[0].mxu0
        %v1114 = vadd.f32 0.0, %v1113
        %v1115 = vpop.f32.mrb[0].mxu0
        %v1116 = vpop.f32.mrb[0].mxu0
        %1117 = vdwg.mxu0
        %v1118 = vadd.f32 %v1031, %v1071
        %v1119 = vadd.f32 %v1032, %v1073
        %v1120 = vadd.f32 %v1033, %v1112
        %v1121 = vadd.f32 %v1034, %v1114
        %v1122 = vxor.u32 %v1118, 2147483648
        %v1123 = vmul.f32 %v1122, 1.442695
        %v1124 = vpow.pop %v1123
        %v1125 = vadd.f32 %v1124, 1.0
        %v1126 = vrcp.pop %v1125
        %v1127 = vmul.f32 1.0, %v1126
        %v1128 = vxor.u32 %v1119, 2147483648
        %v1129 = vmul.f32 %v1128, 1.442695
        %v1130 = vpow.pop %v1129
        %v1131 = vadd.f32 %v1130, 1.0
        %v1132 = vrcp.pop %v1131
        %v1133 = vmul.f32 1.0, %v1132
        %v1134 = vtanh.pop %v1120
        %v1135 = vxor.u32 %v1121, 2147483648
        %v1136 = vmul.f32 %v1135, 1.442695
        %v1137 = vpow.pop %v1136
        %v1138 = vadd.f32 %v1137, 1.0
        %v1139 = vrcp.pop %v1138
        %v1140 = vmul.f32 1.0, %v1139
        %v1141 = vmul.f32 %v1133, %v1027
        %v1142 = vmul.f32 %v1127, %v1134
        %v1143 = vadd.f32 %v1141, %v1142
        %v1144 = vtanh.pop %v1143
        %v1145 = vmul.f32 %v1140, %v1144
        %1146 = vst [vmem:[#allocation2 + $0x10] sm:$0xff] %v1145
        %v1147 = vld [vmem:[#allocation3 + $0x60] sm:$0xff]
        %v1148 = vld [vmem:[#allocation3 + $0x68] sm:$0xff]
        %v1149 = vld [vmem:[#allocation3 + $0x70] sm:$0xff]
        %v1150 = vld [vmem:[#allocation3 + $0x78] sm:$0xff]
        %v1151 = vpack.c.bf16 %v1145, %v1145
        %1152 = vmatprep.subr.bf16.mxu0 %v769
        %1153 = vmatpush1.bf16.msra.mxu0 %v768
        %1154 = vmatprep.subr.bf16.mxu0 %v773
        %1155 = vmatpush1.bf16.msra.mxu0 %v772
        %1156 = vmatprep.subr.bf16.mxu0 %v777
        %1157 = vmatpush1.bf16.msra.mxu0 %v776
        %1158 = vmatprep.subr.bf16.mxu0 %v781
        %1159 = vmatpush1.bf16.msra.mxu0 %v780
        %1160 = vmatprep.subr.bf16.mxu0 %v785
        %1161 = vmatpush1.bf16.msra.mxu0 %v784
        %1162 = vmatprep.subr.bf16.mxu0 %v789
        %1163 = vmatpush1.bf16.msra.mxu0 %v788
        %1164 = vmatprep.subr.bf16.mxu0 %v793
        %1165 = vmatpush1.bf16.msra.mxu0 %v792
        %1166 = vmatprep.subr.bf16.mxu0 %v797
        %1167 = vmatpush1.bf16.msra.mxu0 %v796
        %1168 = vmatprep.subr.bf16.mxu0 0
        %1169 = vmatpush1.bf16.msra.mxu0 0
        %1170 = vmatprep.subr.bf16.mxu0 0
        %1171 = vmatpush1.bf16.msra.mxu0 0
        %1172 = vmatprep.subr.bf16.mxu0 0
        %1173 = vmatpush1.bf16.msra.mxu0 0
        %1174 = vmatprep.subr.bf16.mxu0 0
        %1175 = vmatpush1.bf16.msra.mxu0 0
        %1176 = vmatprep.subr.bf16.mxu0 0
        %1177 = vmatpush1.bf16.msra.mxu0 0
        %1178 = vmatprep.subr.bf16.mxu0 0
        %1179 = vmatpush1.bf16.msra.mxu0 0
        %1180 = vmatprep.subr.bf16.mxu0 0
        %1181 = vmatpush1.bf16.msra.mxu0 0
        %1182 = vmatprep.subr.bf16.mxu0 0
        %1183 = vmatpush1.bf16.msra.mxu0 0
        %1184 = vmatprep.mubr.bf16.mxu0 0
        %1185 = vmatmul.mubr.bf16.gmra.mrb[0].mxu0 %v1151
        %v1186 = vpop.f32.mrb[0].mxu0
        %v1187 = vadd.f32 0.0, %v1186
        %v1188 = vpop.f32.mrb[0].mxu0
        %v1189 = vadd.f32 0.0, %v1188
        %v1190 = vpop.f32.mrb[0].mxu0
        %v1191 = vpop.f32.mrb[0].mxu0
        %1192 = vdwg.mxu0
        %1193 = vmatprep.subr.bf16.mxu0 %v771
        %1194 = vmatpush1.bf16.msra.mxu0 %v770
        %1195 = vmatprep.subr.bf16.mxu0 %v775
        %1196 = vmatpush1.bf16.msra.mxu0 %v774
        %1197 = vmatprep.subr.bf16.mxu0 %v779
        %1198 = vmatpush1.bf16.msra.mxu0 %v778
        %1199 = vmatprep.subr.bf16.mxu0 %v783
        %1200 = vmatpush1.bf16.msra.mxu0 %v782
        %1201 = vmatprep.subr.bf16.mxu0 %v787
        %1202 = vmatpush1.bf16.msra.mxu0 %v786
        %1203 = vmatprep.subr.bf16.mxu0 %v791
        %1204 = vmatpush1.bf16.msra.mxu0 %v790
        %1205 = vmatprep.subr.bf16.mxu0 %v795
        %1206 = vmatpush1.bf16.msra.mxu0 %v794
        %1207 = vmatprep.subr.bf16.mxu0 %v799
        %1208 = vmatpush1.bf16.msra.mxu0 %v798
        %1209 = vmatprep.subr.bf16.mxu0 0
        %1210 = vmatpush1.bf16.msra.mxu0 0
        %1211 = vmatprep.subr.bf16.mxu0 0
        %1212 = vmatpush1.bf16.msra.mxu0 0
        %1213 = vmatprep.subr.bf16.mxu0 0
        %1214 = vmatpush1.bf16.msra.mxu0 0
        %1215 = vmatprep.subr.bf16.mxu0 0
        %1216 = vmatpush1.bf16.msra.mxu0 0
        %1217 = vmatprep.subr.bf16.mxu0 0
        %1218 = vmatpush1.bf16.msra.mxu0 0
        %1219 = vmatprep.subr.bf16.mxu0 0
        %1220 = vmatpush1.bf16.msra.mxu0 0
        %1221 = vmatprep.subr.bf16.mxu0 0
        %1222 = vmatpush1.bf16.msra.mxu0 0
        %1223 = vmatprep.subr.bf16.mxu0 0
        %1224 = vmatpush1.bf16.msra.mxu0 0
        %1225 = vmatprep.mubr.bf16.mxu0 0
        %1226 = vmatmul.mubr.bf16.gmra.mrb[0].mxu0 %v1151
        %v1227 = vpop.f32.mrb[0].mxu0
        %v1228 = vadd.f32 0.0, %v1227
        %v1229 = vpop.f32.mrb[0].mxu0
        %v1230 = vadd.f32 0.0, %v1229
        %v1231 = vpop.f32.mrb[0].mxu0
        %v1232 = vpop.f32.mrb[0].mxu0
        %1233 = vdwg.mxu0
        %v1234 = vadd.f32 %v1147, %v1187
        %v1235 = vadd.f32 %v1148, %v1189
        %v1236 = vadd.f32 %v1149, %v1228
        %v1237 = vadd.f32 %v1150, %v1230
        %v1238 = vxor.u32 %v1234, 2147483648
        %v1239 = vmul.f32 %v1238, 1.442695
        %v1240 = vpow.pop %v1239
        %v1241 = vadd.f32 %v1240, 1.0
        %v1242 = vrcp.pop %v1241
        %v1243 = vmul.f32 1.0, %v1242
        %v1244 = vxor.u32 %v1235, 2147483648
        %v1245 = vmul.f32 %v1244, 1.442695
        %v1246 = vpow.pop %v1245
        %v1247 = vadd.f32 %v1246, 1.0
        %v1248 = vrcp.pop %v1247
        %v1249 = vmul.f32 1.0, %v1248
        %v1250 = vtanh.pop %v1236
        %v1251 = vxor.u32 %v1237, 2147483648
        %v1252 = vmul.f32 %v1251, 1.442695
        %v1253 = vpow.pop %v1252
        %v1254 = vadd.f32 %v1253, 1.0
        %v1255 = vrcp.pop %v1254
        %v1256 = vmul.f32 1.0, %v1255
        %v1257 = vmul.f32 %v1249, %v1143
        %v1258 = vmul.f32 %v1243, %v1250
        %v1259 = vadd.f32 %v1257, %v1258
        %v1260 = vtanh.pop %v1259
        %v1261 = vmul.f32 %v1256, %v1260
        %1262 = vst [vmem:[#allocation2 + $0x18] sm:$0xff] %v1261
        %v1263 = vld [vmem:[#allocation3 + $0x80] sm:$0xff]
        %v1264 = vld [vmem:[#allocation3 + $0x88] sm:$0xff]
        %v1265 = vld [vmem:[#allocation3 + $0x90] sm:$0xff]
        %v1266 = vld [vmem:[#allocation3 + $0x98] sm:$0xff]
        %v1267 = vpack.c.bf16 %v1261, %v1261
        %1268 = vmatprep.subr.bf16.mxu0 %v769
        %1269 = vmatpush1.bf16.msra.mxu0 %v768
        %1270 = vmatprep.subr.bf16.mxu0 %v773
        %1271 = vmatpush1.bf16.msra.mxu0 %v772
        %1272 = vmatprep.subr.bf16.mxu0 %v777
        %1273 = vmatpush1.bf16.msra.mxu0 %v776
        %1274 = vmatprep.subr.bf16.mxu0 %v781
        %1275 = vmatpush1.bf16.msra.mxu0 %v780
        %1276 = vmatprep.subr.bf16.mxu0 %v785
        %1277 = vmatpush1.bf16.msra.mxu0 %v784
        %1278 = vmatprep.subr.bf16.mxu0 %v789
        %1279 = vmatpush1.bf16.msra.mxu0 %v788
        %1280 = vmatprep.subr.bf16.mxu0 %v793
        %1281 = vmatpush1.bf16.msra.mxu0 %v792
        %1282 = vmatprep.subr.bf16.mxu0 %v797
        %1283 = vmatpush1.bf16.msra.mxu0 %v796
        %1284 = vmatprep.subr.bf16.mxu0 0
        %1285 = vmatpush1.bf16.msra.mxu0 0
        %1286 = vmatprep.subr.bf16.mxu0 0
        %1287 = vmatpush1.bf16.msra.mxu0 0
        %1288 = vmatprep.subr.bf16.mxu0 0
        %1289 = vmatpush1.bf16.msra.mxu0 0
        %1290 = vmatprep.subr.bf16.mxu0 0
        %1291 = vmatpush1.bf16.msra.mxu0 0
        %1292 = vmatprep.subr.bf16.mxu0 0
        %1293 = vmatpush1.bf16.msra.mxu0 0
        %1294 = vmatprep.subr.bf16.mxu0 0
        %1295 = vmatpush1.bf16.msra.mxu0 0
        %1296 = vmatprep.subr.bf16.mxu0 0
        %1297 = vmatpush1.bf16.msra.mxu0 0
        %1298 = vmatprep.subr.bf16.mxu0 0
        %1299 = vmatpush1.bf16.msra.mxu0 0
        %1300 = vmatprep.mubr.bf16.mxu0 0
        %1301 = vmatmul.mubr.bf16.gmra.mrb[0].mxu0 %v1267
        %v1302 = vpop.f32.mrb[0].mxu0
        %v1303 = vadd.f32 0.0, %v1302
        %v1304 = vpop.f32.mrb[0].mxu0
        %v1305 = vadd.f32 0.0, %v1304
        %v1306 = vpop.f32.mrb[0].mxu0
        %v1307 = vpop.f32.mrb[0].mxu0
        %1308 = vdwg.mxu0
        %1309 = vmatprep.subr.bf16.mxu0 %v771
        %1310 = vmatpush1.bf16.msra.mxu0 %v770
        %1311 = vmatprep.subr.bf16.mxu0 %v775
        %1312 = vmatpush1.bf16.msra.mxu0 %v774
        %1313 = vmatprep.subr.bf16.mxu0 %v779
        %1314 = vmatpush1.bf16.msra.mxu0 %v778
        %1315 = vmatprep.subr.bf16.mxu0 %v783
        %1316 = vmatpush1.bf16.msra.mxu0 %v782
        %1317 = vmatprep.subr.bf16.mxu0 %v787
        %1318 = vmatpush1.bf16.msra.mxu0 %v786
        %1319 = vmatprep.subr.bf16.mxu0 %v791
        %1320 = vmatpush1.bf16.msra.mxu0 %v790
        %1321 = vmatprep.subr.bf16.mxu0 %v795
        %1322 = vmatpush1.bf16.msra.mxu0 %v794
        %1323 = vmatprep.subr.bf16.mxu0 %v799
        %1324 = vmatpush1.bf16.msra.mxu0 %v798
        %1325 = vmatprep.subr.bf16.mxu0 0
        %1326 = vmatpush1.bf16.msra.mxu0 0
        %1327 = vmatprep.subr.bf16.mxu0 0
        %1328 = vmatpush1.bf16.msra.mxu0 0
        %1329 = vmatprep.subr.bf16.mxu0 0
        %1330 = vmatpush1.bf16.msra.mxu0 0
        %1331 = vmatprep.subr.bf16.mxu0 0
        %1332 = vmatpush1.bf16.msra.mxu0 0
        %1333 = vmatprep.subr.bf16.mxu0 0
        %1334 = vmatpush1.bf16.msra.mxu0 0
        %1335 = vmatprep.subr.bf16.mxu0 0
        %1336 = vmatpush1.bf16.msra.mxu0 0
        %1337 = vmatprep.subr.bf16.mxu0 0
        %1338 = vmatpush1.bf16.msra.mxu0 0
        %1339 = vmatprep.subr.bf16.mxu0 0
        %1340 = vmatpush1.bf16.msra.mxu0 0
        %1341 = vmatprep.mubr.bf16.mxu0 0
        %1342 = vmatmul.mubr.bf16.gmra.mrb[0].mxu0 %v1267
        %v1343 = vpop.f32.mrb[0].mxu0
        %v1344 = vadd.f32 0.0, %v1343
        %v1345 = vpop.f32.mrb[0].mxu0
        %v1346 = vadd.f32 0.0, %v1345
        %v1347 = vpop.f32.mrb[0].mxu0
        %v1348 = vpop.f32.mrb[0].mxu0
        %1349 = vdwg.mxu0
        %v1350 = vadd.f32 %v1263, %v1303
        %v1351 = vadd.f32 %v1264, %v1305
        %v1352 = vadd.f32 %v1265, %v1344
        %v1353 = vadd.f32 %v1266, %v1346
        %v1354 = vxor.u32 %v1350, 2147483648
        %v1355 = vmul.f32 %v1354, 1.442695
        %v1356 = vpow.pop %v1355
        %v1357 = vadd.f32 %v1356, 1.0
        %v1358 = vrcp.pop %v1357
        %v1359 = vmul.f32 1.0, %v1358
        %v1360 = vxor.u32 %v1351, 2147483648
        %v1361 = vmul.f32 %v1360, 1.442695
        %v1362 = vpow.pop %v1361
        %v1363 = vadd.f32 %v1362, 1.0
        %v1364 = vrcp.pop %v1363
        %v1365 = vmul.f32 1.0, %v1364
        %v1366 = vtanh.pop %v1352
        %v1367 = vxor.u32 %v1353, 2147483648
        %v1368 = vmul.f32 %v1367, 1.442695
        %v1369 = vpow.pop %v1368
        %v1370 = vadd.f32 %v1369, 1.0
        %v1371 = vrcp.pop %v1370
        %v1372 = vmul.f32 1.0, %v1371
        %v1373 = vmul.f32 %v1365, %v1259
        %v1374 = vmul.f32 %v1359, %v1366
        %v1375 = vadd.f32 %v1373, %v1374
        %v1376 = vtanh.pop %v1375
        %v1377 = vmul.f32 %v1372, %v1376
        %1378 = vst [vmem:[#allocation2 + $0x20] sm:$0xff] %v1377
        %v1379 = vld [vmem:[#allocation3 + $0xa0] sm:$0xff]
        %v1380 = vld [vmem:[#allocation3 + $0xa8] sm:$0xff]
        %v1381 = vld [vmem:[#allocation3 + $0xb0] sm:$0xff]
        %v1382 = vld [vmem:[#allocation3 + $0xb8] sm:$0xff]
        %v1383 = vpack.c.bf16 %v1377, %v1377
        %1384 = vmatprep.subr.bf16.mxu0 %v769
        %1385 = vmatpush1.bf16.msra.mxu0 %v768
        %1386 = vmatprep.subr.bf16.mxu0 %v773
        %1387 = vmatpush1.bf16.msra.mxu0 %v772
        %1388 = vmatprep.subr.bf16.mxu0 %v777
        %1389 = vmatpush1.bf16.msra.mxu0 %v776
        %1390 = vmatprep.subr.bf16.mxu0 %v781
        %1391 = vmatpush1.bf16.msra.mxu0 %v780
        %1392 = vmatprep.subr.bf16.mxu0 %v785
        %1393 = vmatpush1.bf16.msra.mxu0 %v784
        %1394 = vmatprep.subr.bf16.mxu0 %v789
        %1395 = vmatpush1.bf16.msra.mxu0 %v788
        %1396 = vmatprep.subr.bf16.mxu0 %v793
        %1397 = vmatpush1.bf16.msra.mxu0 %v792
        %1398 = vmatprep.subr.bf16.mxu0 %v797
        %1399 = vmatpush1.bf16.msra.mxu0 %v796
        %1400 = vmatprep.subr.bf16.mxu0 0
        %1401 = vmatpush1.bf16.msra.mxu0 0
        %1402 = vmatprep.subr.bf16.mxu0 0
        %1403 = vmatpush1.bf16.msra.mxu0 0
        %1404 = vmatprep.subr.bf16.mxu0 0
        %1405 = vmatpush1.bf16.msra.mxu0 0
        %1406 = vmatprep.subr.bf16.mxu0 0
        %1407 = vmatpush1.bf16.msra.mxu0 0
        %1408 = vmatprep.subr.bf16.mxu0 0
        %1409 = vmatpush1.bf16.msra.mxu0 0
        %1410 = vmatprep.subr.bf16.mxu0 0
        %1411 = vmatpush1.bf16.msra.mxu0 0
        %1412 = vmatprep.subr.bf16.mxu0 0
        %1413 = vmatpush1.bf16.msra.mxu0 0
        %1414 = vmatprep.subr.bf16.mxu0 0
        %1415 = vmatpush1.bf16.msra.mxu0 0
        %1416 = vmatprep.mubr.bf16.mxu0 0
        %1417 = vmatmul.mubr.bf16.gmra.mrb[0].mxu0 %v1383
        %v1418 = vpop.f32.mrb[0].mxu0
        %v1419 = vadd.f32 0.0, %v1418
        %v1420 = vpop.f32.mrb[0].mxu0
        %v1421 = vadd.f32 0.0, %v1420
        %v1422 = vpop.f32.mrb[0].mxu0
        %v1423 = vpop.f32.mrb[0].mxu0
        %1424 = vdwg.mxu0
        %1425 = vmatprep.subr.bf16.mxu0 %v771
        %1426 = vmatpush1.bf16.msra.mxu0 %v770
        %1427 = vmatprep.subr.bf16.mxu0 %v775
        %1428 = vmatpush1.bf16.msra.mxu0 %v774
        %1429 = vmatprep.subr.bf16.mxu0 %v779
        %1430 = vmatpush1.bf16.msra.mxu0 %v778
        %1431 = vmatprep.subr.bf16.mxu0 %v783
        %1432 = vmatpush1.bf16.msra.mxu0 %v782
        %1433 = vmatprep.subr.bf16.mxu0 %v787
        %1434 = vmatpush1.bf16.msra.mxu0 %v786
        %1435 = vmatprep.subr.bf16.mxu0 %v791
        %1436 = vmatpush1.bf16.msra.mxu0 %v790
        %1437 = vmatprep.subr.bf16.mxu0 %v795
        %1438 = vmatpush1.bf16.msra.mxu0 %v794
        %1439 = vmatprep.subr.bf16.mxu0 %v799
        %1440 = vmatpush1.bf16.msra.mxu0 %v798
        %1441 = vmatprep.subr.bf16.mxu0 0
        %1442 = vmatpush1.bf16.msra.mxu0 0
        %1443 = vmatprep.subr.bf16.mxu0 0
        %1444 = vmatpush1.bf16.msra.mxu0 0
        %1445 = vmatprep.subr.bf16.mxu0 0
        %1446 = vmatpush1.bf16.msra.mxu0 0
        %1447 = vmatprep.subr.bf16.mxu0 0
        %1448 = vmatpush1.bf16.msra.mxu0 0
        %1449 = vmatprep.subr.bf16.mxu0 0
        %1450 = vmatpush1.bf16.msra.mxu0 0
        %1451 = vmatprep.subr.bf16.mxu0 0
        %1452 = vmatpush1.bf16.msra.mxu0 0
        %1453 = vmatprep.subr.bf16.mxu0 0
        %1454 = vmatpush1.bf16.msra.mxu0 0
        %1455 = vmatprep.subr.bf16.mxu0 0
        %1456 = vmatpush1.bf16.msra.mxu0 0
        %1457 = vmatprep.mubr.bf16.mxu0 0
        %1458 = vmatmul.mubr.bf16.gmra.mrb[0].mxu0 %v1383
        %v1459 = vpop.f32.mrb[0].mxu0
        %v1460 = vadd.f32 0.0, %v1459
        %v1461 = vpop.f32.mrb[0].mxu0
        %v1462 = vadd.f32 0.0, %v1461
        %v1463 = vpop.f32.mrb[0].mxu0
        %v1464 = vpop.f32.mrb[0].mxu0
        %1465 = vdwg.mxu0
        %v1466 = vadd.f32 %v1379, %v1419
        %v1467 = vadd.f32 %v1380, %v1421
        %v1468 = vadd.f32 %v1381, %v1460
        %v1469 = vadd.f32 %v1382, %v1462
        %v1470 = vxor.u32 %v1466, 2147483648
        %v1471 = vmul.f32 %v1470, 1.442695
        %v1472 = vpow.pop %v1471
        %v1473 = vadd.f32 %v1472, 1.0
        %v1474 = vrcp.pop %v1473
        %v1475 = vmul.f32 1.0, %v1474
        %v1476 = vxor.u32 %v1467, 2147483648
        %v1477 = vmul.f32 %v1476, 1.442695
        %v1478 = vpow.pop %v1477
        %v1479 = vadd.f32 %v1478, 1.0
        %v1480 = vrcp.pop %v1479
        %v1481 = vmul.f32 1.0, %v1480
        %v1482 = vtanh.pop %v1468
        %v1483 = vxor.u32 %v1469, 2147483648
        %v1484 = vmul.f32 %v1483, 1.442695
        %v1485 = vpow.pop %v1484
        %v1486 = vadd.f32 %v1485, 1.0
        %v1487 = vrcp.pop %v1486
        %v1488 = vmul.f32 1.0, %v1487
        %v1489 = vmul.f32 %v1481, %v1375
        %v1490 = vmul.f32 %v1475, %v1482
        %v1491 = vadd.f32 %v1489, %v1490
        %v1492 = vtanh.pop %v1491
        %v1493 = vmul.f32 %v1488, %v1492
        %1494 = vst [vmem:[#allocation2 + $0x28] sm:$0xff] %v1493
        %v1495 = vld [vmem:[#allocation3 + $0xc0] sm:$0xff]
        %v1496 = vld [vmem:[#allocation3 + $0xc8] sm:$0xff]
        %v1497 = vld [vmem:[#allocation3 + $0xd0] sm:$0xff]
        %v1498 = vld [vmem:[#allocation3 + $0xd8] sm:$0xff]
        %v1499 = vpack.c.bf16 %v1493, %v1493
        %1500 = vmatprep.subr.bf16.mxu0 %v769
        %1501 = vmatpush1.bf16.msra.mxu0 %v768
        %1502 = vmatprep.subr.bf16.mxu0 %v773
        %1503 = vmatpush1.bf16.msra.mxu0 %v772
        %1504 = vmatprep.subr.bf16.mxu0 %v777
        %1505 = vmatpush1.bf16.msra.mxu0 %v776
        %1506 = vmatprep.subr.bf16.mxu0 %v781
        %1507 = vmatpush1.bf16.msra.mxu0 %v780
        %1508 = vmatprep.subr.bf16.mxu0 %v785
        %1509 = vmatpush1.bf16.msra.mxu0 %v784
        %1510 = vmatprep.subr.bf16.mxu0 %v789
        %1511 = vmatpush1.bf16.msra.mxu0 %v788
        %1512 = vmatprep.subr.bf16.mxu0 %v793
        %1513 = vmatpush1.bf16.msra.mxu0 %v792
        %1514 = vmatprep.subr.bf16.mxu0 %v797
        %1515 = vmatpush1.bf16.msra.mxu0 %v796
        %1516 = vmatprep.subr.bf16.mxu0 0
        %1517 = vmatpush1.bf16.msra.mxu0 0
        %1518 = vmatprep.subr.bf16.mxu0 0
        %1519 = vmatpush1.bf16.msra.mxu0 0
        %1520 = vmatprep.subr.bf16.mxu0 0
        %1521 = vmatpush1.bf16.msra.mxu0 0
        %1522 = vmatprep.subr.bf16.mxu0 0
        %1523 = vmatpush1.bf16.msra.mxu0 0
        %1524 = vmatprep.subr.bf16.mxu0 0
        %1525 = vmatpush1.bf16.msra.mxu0 0
        %1526 = vmatprep.subr.bf16.mxu0 0
        %1527 = vmatpush1.bf16.msra.mxu0 0
        %1528 = vmatprep.subr.bf16.mxu0 0
        %1529 = vmatpush1.bf16.msra.mxu0 0
        %1530 = vmatprep.subr.bf16.mxu0 0
        %1531 = vmatpush1.bf16.msra.mxu0 0
        %1532 = vmatprep.mubr.bf16.mxu0 0
        %1533 = vmatmul.mubr.bf16.gmra.mrb[0].mxu0 %v1499
        %v1534 = vpop.f32.mrb[0].mxu0
        %v1535 = vadd.f32 0.0, %v1534
        %v1536 = vpop.f32.mrb[0].mxu0
        %v1537 = vadd.f32 0.0, %v1536
        %v1538 = vpop.f32.mrb[0].mxu0
        %v1539 = vpop.f32.mrb[0].mxu0
        %1540 = vdwg.mxu0
        %1541 = vmatprep.subr.bf16.mxu0 %v771
        %1542 = vmatpush1.bf16.msra.mxu0 %v770
        %1543 = vmatprep.subr.bf16.mxu0 %v775
        %1544 = vmatpush1.bf16.msra.mxu0 %v774
        %1545 = vmatprep.subr.bf16.mxu0 %v779
        %1546 = vmatpush1.bf16.msra.mxu0 %v778
        %1547 = vmatprep.subr.bf16.mxu0 %v783
        %1548 = vmatpush1.bf16.msra.mxu0 %v782
        %1549 = vmatprep.subr.bf16.mxu0 %v787
        %1550 = vmatpush1.bf16.msra.mxu0 %v786
        %1551 = vmatprep.subr.bf16.mxu0 %v791
        %1552 = vmatpush1.bf16.msra.mxu0 %v790
        %1553 = vmatprep.subr.bf16.mxu0 %v795
        %1554 = vmatpush1.bf16.msra.mxu0 %v794
        %1555 = vmatprep.subr.bf16.mxu0 %v799
        %1556 = vmatpush1.bf16.msra.mxu0 %v798
        %1557 = vmatprep.subr.bf16.mxu0 0
        %1558 = vmatpush1.bf16.msra.mxu0 0
        %1559 = vmatprep.subr.bf16.mxu0 0
        %1560 = vmatpush1.bf16.msra.mxu0 0
        %1561 = vmatprep.subr.bf16.mxu0 0
        %1562 = vmatpush1.bf16.msra.mxu0 0
        %1563 = vmatprep.subr.bf16.mxu0 0
        %1564 = vmatpush1.bf16.msra.mxu0 0
        %1565 = vmatprep.subr.bf16.mxu0 0
        %1566 = vmatpush1.bf16.msra.mxu0 0
        %1567 = vmatprep.subr.bf16.mxu0 0
        %1568 = vmatpush1.bf16.msra.mxu0 0
        %1569 = vmatprep.subr.bf16.mxu0 0
        %1570 = vmatpush1.bf16.msra.mxu0 0
        %1571 = vmatprep.subr.bf16.mxu0 0
        %1572 = vmatpush1.bf16.msra.mxu0 0
        %1573 = vmatprep.mubr.bf16.mxu0 0
        %1574 = vmatmul.mubr.bf16.gmra.mrb[0].mxu0 %v1499
        %v1575 = vpop.f32.mrb[0].mxu0
        %v1576 = vadd.f32 0.0, %v1575
        %v1577 = vpop.f32.mrb[0].mxu0
        %v1578 = vadd.f32 0.0, %v1577
        %v1579 = vpop.f32.mrb[0].mxu0
        %v1580 = vpop.f32.mrb[0].mxu0
        %1581 = vdwg.mxu0
        %v1582 = vadd.f32 %v1495, %v1535
        %v1583 = vadd.f32 %v1496, %v1537
        %v1584 = vadd.f32 %v1497, %v1576
        %v1585 = vadd.f32 %v1498, %v1578
        %v1586 = vxor.u32 %v1582, 2147483648
        %v1587 = vmul.f32 %v1586, 1.442695
        %v1588 = vpow.pop %v1587
        %v1589 = vadd.f32 %v1588, 1.0
        %v1590 = vrcp.pop %v1589
        %v1591 = vmul.f32 1.0, %v1590
        %v1592 = vxor.u32 %v1583, 2147483648
        %v1593 = vmul.f32 %v1592, 1.442695
        %v1594 = vpow.pop %v1593
        %v1595 = vadd.f32 %v1594, 1.0
        %v1596 = vrcp.pop %v1595
        %v1597 = vmul.f32 1.0, %v1596
        %v1598 = vtanh.pop %v1584
        %v1599 = vxor.u32 %v1585, 2147483648
        %v1600 = vmul.f32 %v1599, 1.442695
        %v1601 = vpow.pop %v1600
        %v1602 = vadd.f32 %v1601, 1.0
        %v1603 = vrcp.pop %v1602
        %v1604 = vmul.f32 1.0, %v1603
        %v1605 = vmul.f32 %v1597, %v1491
        %v1606 = vmul.f32 %v1591, %v1598
        %v1607 = vadd.f32 %v1605, %v1606
        %v1608 = vtanh.pop %v1607
        %v1609 = vmul.f32 %v1604, %v1608
        %1610 = vst [vmem:[#allocation2 + $0x30] sm:$0xff] %v1609
        %v1611 = vld [vmem:[#allocation3 + $0xe0] sm:$0xff]
        %v1612 = vld [vmem:[#allocation3 + $0xe8] sm:$0xff]
        %v1613 = vld [vmem:[#allocation3 + $0xf0] sm:$0xff]
        %v1614 = vld [vmem:[#allocation3 + $0xf8] sm:$0xff]
        %v1615 = vpack.c.bf16 %v1609, %v1609
        %1616 = vmatprep.subr.bf16.mxu0 %v769
        %1617 = vmatpush1.bf16.msra.mxu0 %v768
        %1618 = vmatprep.subr.bf16.mxu0 %v773
        %1619 = vmatpush1.bf16.msra.mxu0 %v772
        %1620 = vmatprep.subr.bf16.mxu0 %v777
        %1621 = vmatpush1.bf16.msra.mxu0 %v776
        %1622 = vmatprep.subr.bf16.mxu0 %v781
        %1623 = vmatpush1.bf16.msra.mxu0 %v780
        %1624 = vmatprep.subr.bf16.mxu0 %v785
        %1625 = vmatpush1.bf16.msra.mxu0 %v784
        %1626 = vmatprep.subr.bf16.mxu0 %v789
        %1627 = vmatpush1.bf16.msra.mxu0 %v788
        %1628 = vmatprep.subr.bf16.mxu0 %v793
        %1629 = vmatpush1.bf16.msra.mxu0 %v792
        %1630 = vmatprep.subr.bf16.mxu0 %v797
        %1631 = vmatpush1.bf16.msra.mxu0 %v796
        %1632 = vmatprep.subr.bf16.mxu0 0
        %1633 = vmatpush1.bf16.msra.mxu0 0
        %1634 = vmatprep.subr.bf16.mxu0 0
        %1635 = vmatpush1.bf16.msra.mxu0 0
        %1636 = vmatprep.subr.bf16.mxu0 0
        %1637 = vmatpush1.bf16.msra.mxu0 0
        %1638 = vmatprep.subr.bf16.mxu0 0
        %1639 = vmatpush1.bf16.msra.mxu0 0
        %1640 = vmatprep.subr.bf16.mxu0 0
        %1641 = vmatpush1.bf16.msra.mxu0 0
        %1642 = vmatprep.subr.bf16.mxu0 0
        %1643 = vmatpush1.bf16.msra.mxu0 0
        %1644 = vmatprep.subr.bf16.mxu0 0
        %1645 = vmatpush1.bf16.msra.mxu0 0
        %1646 = vmatprep.subr.bf16.mxu0 0
        %1647 = vmatpush1.bf16.msra.mxu0 0
        %1648 = vmatprep.mubr.bf16.mxu0 0
        %1649 = vmatmul.mubr.bf16.gmra.mrb[0].mxu0 %v1615
        %v1650 = vpop.f32.mrb[0].mxu0
        %v1651 = vadd.f32 0.0, %v1650
        %v1652 = vpop.f32.mrb[0].mxu0
        %v1653 = vadd.f32 0.0, %v1652
        %v1654 = vpop.f32.mrb[0].mxu0
        %v1655 = vpop.f32.mrb[0].mxu0
        %1656 = vdwg.mxu0
        %1657 = vmatprep.subr.bf16.mxu0 %v771
        %1658 = vmatpush1.bf16.msra.mxu0 %v770
        %1659 = vmatprep.subr.bf16.mxu0 %v775
        %1660 = vmatpush1.bf16.msra.mxu0 %v774
        %1661 = vmatprep.subr.bf16.mxu0 %v779
        %1662 = vmatpush1.bf16.msra.mxu0 %v778
        %1663 = vmatprep.subr.bf16.mxu0 %v783
        %1664 = vmatpush1.bf16.msra.mxu0 %v782
        %1665 = vmatprep.subr.bf16.mxu0 %v787
        %1666 = vmatpush1.bf16.msra.mxu0 %v786
        %1667 = vmatprep.subr.bf16.mxu0 %v791
        %1668 = vmatpush1.bf16.msra.mxu0 %v790
        %1669 = vmatprep.subr.bf16.mxu0 %v795
        %1670 = vmatpush1.bf16.msra.mxu0 %v794
        %1671 = vmatprep.subr.bf16.mxu0 %v799
        %1672 = vmatpush1.bf16.msra.mxu0 %v798
        %1673 = vmatprep.subr.bf16.mxu0 0
        %1674 = vmatpush1.bf16.msra.mxu0 0
        %1675 = vmatprep.subr.bf16.mxu0 0
        %1676 = vmatpush1.bf16.msra.mxu0 0
        %1677 = vmatprep.subr.bf16.mxu0 0
        %1678 = vmatpush1.bf16.msra.mxu0 0
        %1679 = vmatprep.subr.bf16.mxu0 0
        %1680 = vmatpush1.bf16.msra.mxu0 0
        %1681 = vmatprep.subr.bf16.mxu0 0
        %1682 = vmatpush1.bf16.msra.mxu0 0
        %1683 = vmatprep.subr.bf16.mxu0 0
        %1684 = vmatpush1.bf16.msra.mxu0 0
        %1685 = vmatprep.subr.bf16.mxu0 0
        %1686 = vmatpush1.bf16.msra.mxu0 0
        %1687 = vmatprep.subr.bf16.mxu0 0
        %1688 = vmatpush1.bf16.msra.mxu0 0
        %1689 = vmatprep.mubr.bf16.mxu0 0
        %1690 = vmatmul.mubr.bf16.gmra.mrb[0].mxu0 %v1615
        %v1691 = vpop.f32.mrb[0].mxu0
        %v1692 = vadd.f32 0.0, %v1691
        %v1693 = vpop.f32.mrb[0].mxu0
        %v1694 = vadd.f32 0.0, %v1693
        %v1695 = vpop.f32.mrb[0].mxu0
        %v1696 = vpop.f32.mrb[0].mxu0
        %1697 = vdwg.mxu0
        %v1698 = vadd.f32 %v1611, %v1651
        %v1699 = vadd.f32 %v1612, %v1653
        %v1700 = vadd.f32 %v1613, %v1692
        %v1701 = vadd.f32 %v1614, %v1694
        %v1702 = vxor.u32 %v1698, 2147483648
        %v1703 = vmul.f32 %v1702, 1.442695
        %v1704 = vpow.pop %v1703
        %v1705 = vadd.f32 %v1704, 1.0
        %v1706 = vrcp.pop %v1705
        %v1707 = vmul.f32 1.0, %v1706
        %v1708 = vxor.u32 %v1699, 2147483648
        %v1709 = vmul.f32 %v1708, 1.442695
        %v1710 = vpow.pop %v1709
        %v1711 = vadd.f32 %v1710, 1.0
        %v1712 = vrcp.pop %v1711
        %v1713 = vmul.f32 1.0, %v1712
        %v1714 = vtanh.pop %v1700
        %v1715 = vxor.u32 %v1701, 2147483648
        %v1716 = vmul.f32 %v1715, 1.442695
        %v1717 = vpow.pop %v1716
        %v1718 = vadd.f32 %v1717, 1.0
        %v1719 = vrcp.pop %v1718
        %v1720 = vmul.f32 1.0, %v1719
        %v1721 = vmul.f32 %v1713, %v1607
        %v1722 = vmul.f32 %v1707, %v1714
        %v1723 = vadd.f32 %v1721, %v1722
        %v1724 = vtanh.pop %v1723
        %v1725 = vmul.f32 %v1720, %v1724
        %1726 = vst [vmem:[#allocation2 + $0x38] sm:$0xff] %v1725
        %p1727 = scmp.eq.s32.totalorder %s26, 1
        // Predicated region
        $region73: #{lstm_forward.1} parent=43 // pred_check
          %p1728 = pneg %p1727
        $region74: #{lstm_forward.1} parent=43 // pred_check_branch
          %1730 = sbr.rel (%p1728) target = $region76
        $region75: #{lstm_forward.1} parent=43 // pred_region
          %v1731 = vpack.c.bf16 %v1725, %v1725
          %v1732 = vld [vmem:[#allocation12] sm:$0xff]
          %v1733 = vld [vmem:[#allocation12 + $0x8] sm:$0xff]
          %v1734 = vld [vmem:[#allocation12 + $0x10] sm:$0xff]
          %v1735 = vld [vmem:[#allocation12 + $0x18] sm:$0xff]
          %v1736 = vld [vmem:[#allocation12 + $0x20] sm:$0xff]
          %v1737 = vld [vmem:[#allocation12 + $0x28] sm:$0xff]
          %v1738 = vld [vmem:[#allocation12 + $0x30] sm:$0xff]
          %v1739 = vld [vmem:[#allocation12 + $0x38] sm:$0xff]
          %v1740 = vld [vmem:[#allocation12 + $0x40] sm:$0xff]
          %v1741 = vld [vmem:[#allocation12 + $0x48] sm:$0xff]
          %v1742 = vld [vmem:[#allocation12 + $0x50] sm:$0xff]
          %v1743 = vld [vmem:[#allocation12 + $0x58] sm:$0xff]
          %v1744 = vld [vmem:[#allocation12 + $0x60] sm:$0xff]
          %v1745 = vld [vmem:[#allocation12 + $0x68] sm:$0xff]
          %v1746 = vld [vmem:[#allocation12 + $0x70] sm:$0xff]
          %v1747 = vld [vmem:[#allocation12 + $0x78] sm:$0xff]
          %v1748 = vpack.c.bf16 %v1733, %v1732
          %v1749 = vpack.c.bf16 %v1735, %v1734
          %v1750 = vpack.c.bf16 %v1737, %v1736
          %v1751 = vpack.c.bf16 %v1739, %v1738
          %v1752 = vpack.c.bf16 %v1741, %v1740
          %v1753 = vpack.c.bf16 %v1743, %v1742
          %v1754 = vpack.c.bf16 %v1745, %v1744
          %v1755 = vpack.c.bf16 %v1747, %v1746
          %v1756 = vld [vmem:[#allocation13] sm:$0x1]
          %v1758 = vlaneseq
          %v1759 = vshrl.u32 %v1758, 7
          %v1760 = vsub.s32 0, %v1759
          %v1761 = vrot.slane %v1756, %v1760
          %1763 = vmatprep.subr.bf16.mxu0 0
          %1764 = vmatpush1.bf16.msra.mxu0 %v1748
          %1765 = vmatprep.subr.bf16.mxu0 0
          %1766 = vmatpush1.bf16.msra.mxu0 %v1749
          %1767 = vmatprep.subr.bf16.mxu0 0
          %1768 = vmatpush1.bf16.msra.mxu0 %v1750
          %1769 = vmatprep.subr.bf16.mxu0 0
          %1770 = vmatpush1.bf16.msra.mxu0 %v1751
          %1771 = vmatprep.subr.bf16.mxu0 0
          %1772 = vmatpush1.bf16.msra.mxu0 %v1752
          %1773 = vmatprep.subr.bf16.mxu0 0
          %1774 = vmatpush1.bf16.msra.mxu0 %v1753
          %1775 = vmatprep.subr.bf16.mxu0 0
          %1776 = vmatpush1.bf16.msra.mxu0 %v1754
          %1777 = vmatprep.subr.bf16.mxu0 0
          %1778 = vmatpush1.bf16.msra.mxu0 %v1755
          %1779 = vmatprep.subr.bf16.mxu0 0
          %1780 = vmatpush1.bf16.msra.mxu0 0
          %1781 = vmatprep.subr.bf16.mxu0 0
          %1782 = vmatpush1.bf16.msra.mxu0 0
          %1783 = vmatprep.subr.bf16.mxu0 0
          %1784 = vmatpush1.bf16.msra.mxu0 0
          %1785 = vmatprep.subr.bf16.mxu0 0
          %1786 = vmatpush1.bf16.msra.mxu0 0
          %1787 = vmatprep.subr.bf16.mxu0 0
          %1788 = vmatpush1.bf16.msra.mxu0 0
          %1789 = vmatprep.subr.bf16.mxu0 0
          %1790 = vmatpush1.bf16.msra.mxu0 0
          %1791 = vmatprep.subr.bf16.mxu0 0
          %1792 = vmatpush1.bf16.msra.mxu0 0
          %1793 = vmatprep.subr.bf16.mxu0 0
          %1794 = vmatpush1.bf16.msra.mxu0 0
          %1795 = vmatprep.mubr.bf16.mxu0 0
          %1796 = vmatmul.mubr.bf16.gmra.mrb[0].mxu0 %v1731
          %v1797 = vpop.f32.mrb[0].mxu0
          %v1798 = vadd.f32 %v1761, %v1797
          %v1799 = vpop.f32.mrb[0].mxu0
          %v1800 = vpop.f32.mrb[0].mxu0
          %v1801 = vpop.f32.mrb[0].mxu0
          %1802 = vdwg.mxu0
          %1803 = vst [vmem:[#allocation15] sm:$0xff] %v1798
        $region76: #{lstm_forward.1} parent=43 // pred_fallthru
          _
        // Predicated region
        $region77: #{lstm_forward.1} parent=43 // pred_check
          %p1804 = pneg %p180
        $region78: #{lstm_forward.1} parent=43 // pred_check_branch
          %1806 = sbr.rel (%p1804) target = $region80
        $region79: #{lstm_forward.1} parent=43 // pred_region
          %s1808 = ssub.s32 128, 128
          %1809 = vsyncadd [#allocation6], %s1808
          %s1811 = sshll.u32 [#allocation15], 4
          %s1812 = int_to_ptr.vmem [resolvable:$true] %s1811
          %1814 = dma.vmem_to_hbm [thread:$0]  %s1812, 128, %s6, [#allocation6]
        $region80: #{lstm_forward.1} parent=43 // pred_fallthru
          _
        // Predicated region
        $region81: #{lstm_forward.1} parent=43 // pred_check
          %p1815 = pneg %p180
        $region82: #{lstm_forward.1} parent=43 // pred_check_branch
          %1817 = sbr.rel (%p1815) target = $region84
        $region83: #{lstm_forward.1} parent=43 // pred_region
          %1818 = dma.done [#allocation6], 128
        $region84: #{lstm_forward.1} parent=43 // pred_fallthru
          _
      $region44: #{lstm_forward.1} parent=5 // pred_fallthru
        _
      %p1819 = scmp.le.s32.totalorder 2, %s21
      // Predicated region
      $region85: #{lstm_forward.1} parent=5 // pred_check
        %p1820 = pneg %p1819
      $region86: #{lstm_forward.1} parent=5 // pred_check_branch
        %1822 = sbr.rel (%p1820) target = $region88
      $region87: #{lstm_forward.1} parent=5 // pred_region
        %s1823 = ssub.s32 %s21, 2
      $region88: #{lstm_forward.1} parent=5 // pred_fallthru
        _
    $region6: #{lstm_forward.1} parent=1 // loop_footer
      %s25 = sadd.s32 1, %s21
    $region7: #{lstm_forward.1} parent=1 // loop_footer_branch
      %20 = sbr.rel target = $region3
    $region8: #{lstm_forward.1} parent=1 // loop_exit
      _
    %1824 = vsyncpa [#allocation5], 1
    %s1825 = scalar_lea.sflag [#allocation5], 1
    %1826 = vsyncpa %s1825, 1
    %1827 = vsyncpa [#allocation8], 1
    %s1828 = scalar_lea.sflag [#allocation8], 1
    %1829 = vsyncpa %s1828, 1
    %1830 = vsyncpa [#allocation11], 1
    %s1831 = scalar_lea.sflag [#allocation11], 1
    %1832 = vsyncpa %s1831, 1
    %1833 = vsyncpa [#allocation14], 1
    %1834 = vsyncpa [#allocation6], 1
    %s1835 = scalar_lea.sflag [#allocation6], 1
    %1836 = vsyncpa %s1835, 1

</llo_original>
